<compile_context>
chip_gen: v7x
topology: tpu7x:2x2x1
jax: 0.10.0
libtpu: 0.0.40
codegen_flags: <defaults>
</compile_context>

<pallas_src>
import functools

import jax
import jax.numpy as jnp
from jax.experimental import pallas as pl
from jax.experimental.pallas import tpu as pltpu


# ----------------------------- Pallas kernels ------------------------------ #

def _lin_bn_relu_kernel(x_ref, w_ref, s_ref, t_ref, o_ref):
    # y = relu((x @ W) * scale + shift); linear bias already folded into shift.
    y = jnp.dot(x_ref[...], w_ref[...], preferred_element_type=jnp.float32)
    y = y * s_ref[...] + t_ref[...]
    o_ref[...] = jnp.maximum(y, 0.0).astype(o_ref.dtype)


def _prop_logsoftmax_kernel(h_ref, w_ref, b_ref, a_ref, o_ref, *, k, out_c):
    # Final linear layer (bf16 operands, f32 accumulation on the MXU).
    x0 = jnp.dot(h_ref[...], w_ref[...], preferred_element_type=jnp.float32) + b_ref[...]

    # Adjacency stays resident in VMEM for all K propagation steps.
    a = a_ref[...]
    half_x0 = 0.5 * x0                      # alpha * x0 with alpha = 0.5, hoisted

    def step(_, x):
        ax = jnp.dot(a, x.astype(jnp.bfloat16), preferred_element_type=jnp.float32)
        return 0.5 * ax + half_x0

    x = jax.lax.fori_loop(0, k, step, x0, unroll=True)

    # log_softmax over the real (un-padded) output channels; padded lanes masked.
    col = jax.lax.broadcasted_iota(jnp.int32, x.shape, 1)
    valid = col < out_c
    m = jnp.max(jnp.where(valid, x, -1e30), axis=-1, keepdims=True)
    e = jnp.where(valid, jnp.exp(x - m), 0.0)
    lse = jnp.log(jnp.sum(e, axis=-1, keepdims=True)) + m
    o_ref[...] = x - lse


# ----------------------------- Pallas wrappers ------------------------------ #

_VMEM_LIMIT = 32 * 1024 * 1024  # explicit, safe on v5e/v6e/v7x


def linear_bn_relu(x, wt, scale, shift, *, tm):
    """x: [Npad, Cin_pad] bf16, wt: [Cin_pad, Cout_pad] bf16, scale/shift: [1, Cout_pad] f32."""
    n, cin = x.shape
    cout = wt.shape[1]
    return pl.pallas_call(
        _lin_bn_relu_kernel,
        out_shape=jax.ShapeDtypeStruct((n, cout), jnp.bfloat16),
        grid=(n // tm,),
        in_specs=[
            pl.BlockSpec((tm, cin), lambda i: (i, 0)),
            pl.BlockSpec((cin, cout), lambda i: (0, 0)),
            pl.BlockSpec((1, cout), lambda i: (0, 0)),
            pl.BlockSpec((1, cout), lambda i: (0, 0)),
        ],
        out_specs=pl.BlockSpec((tm, cout), lambda i: (i, 0)),
        compiler_params=pltpu.CompilerParams(
            dimension_semantics=("parallel",),
            vmem_limit_bytes=_VMEM_LIMIT,
        ),
    )(x, wt, scale, shift)


def prop_fused(h, wt, b, adj, *, k, out_c):
    """Fused final-linear + K-step propagation + masked log_softmax (single call)."""
    n = h.shape[0]
    c_pad = wt.shape[1]
    kernel = functools.partial(_prop_logsoftmax_kernel, k=k, out_c=out_c)
    return pl.pallas_call(
        kernel,
        out_shape=jax.ShapeDtypeStruct((n, c_pad), jnp.float32),
        compiler_params=pltpu.CompilerParams(vmem_limit_bytes=_VMEM_LIMIT),
    )(h, wt, b, adj)


# --------------------------- padding / prep glue ---------------------------- #

def _round_up(v, m):
    return ((v + m - 1) // m) * m


def _pad2(a, rows, cols):
    return jnp.pad(a, ((0, rows - a.shape[0]), (0, cols - a.shape[1])))


def prepare_inputs(x, adj_norm, params, *, tm=128, lane=128):
    """Pad rows/lanes to TPU-friendly sizes, fold biases, cast matmul operands to bf16."""
    n = x.shape[0]
    n_pad = _round_up(n, tm)

    x_p = _pad2(x, n_pad, _round_up(x.shape[1], lane)).astype(jnp.bfloat16)
    adj_p = _pad2(adj_norm, n_pad, n_pad).astype(jnp.bfloat16)

    hidden = []
    for layer in params[:-1]:
        wt = layer["wt"]                                   # [cin, cout] f32
        cin_p = _round_up(wt.shape[0], lane)
        cout_p = _round_up(wt.shape[1], lane)
        scale = layer["bn_scale"]
        shift = layer["b"] * scale + layer["bn_shift"]     # fold linear bias into BN shift
        hidden.append({
            "wt": _pad2(wt, cin_p, cout_p).astype(jnp.bfloat16),
            "scale": _pad2(scale, 1, cout_p),
            "shift": _pad2(shift, 1, cout_p),
        })

    last = params[-1]
    wt = last["wt"]
    cin_p = _round_up(wt.shape[0], lane)
    cout_p = _round_up(wt.shape[1], lane)
    last_p = {
        "wt": _pad2(wt, cin_p, cout_p).astype(jnp.bfloat16),
        "b": _pad2(last["b"], 1, cout_p),
    }
    return x_p, adj_p, {"hidden": hidden, "last": last_p}


# ------------------------------ APPNP forward ------------------------------- #

def appnp_forward(x_p, adj_p, prepped, *, k, tm, out_c, n_orig):
    for layer in prepped["hidden"]:
        x_p = linear_bn_relu(x_p, layer["wt"], layer["scale"], layer["shift"], tm=tm)
        # TODO(synk): F.dropout is identity in eval mode; training-mode dropout not implemented.
    last = prepped["last"]
    y = prop_fused(x_p, last["wt"], last["b"], adj_p, k=k, out_c=out_c)
    return y[:n_orig, :out_c]


def reference_forward(x_p, adj_p, prepped, *, k, out_c, n_orig):
    """Pure-JAX reference with the same padding/dtypes, for a correctness check."""
    h = x_p
    for layer in prepped["hidden"]:
        y = jnp.dot(h, layer["wt"], preferred_element_type=jnp.float32)
        y = y * layer["scale"] + layer["shift"]
        h = jnp.maximum(y, 0.0).astype(jnp.bfloat16)
    last = prepped["last"]
    x0 = jnp.dot(h, last["wt"], preferred_element_type=jnp.float32) + last["b"]
    xx = x0
    for _ in range(k):
        ax = jnp.dot(adj_p, xx.astype(jnp.bfloat16), preferred_element_type=jnp.float32)
        xx = 0.5 * ax + 0.5 * x0
    xx = xx[:n_orig, :out_c]
    return jax.nn.log_softmax(xx, axis=-1)


# ------------------------------ parameter init ------------------------------ #

def init_params(key, in_channels, hidden_channels, out_channels, num_layers):
    dims = [in_channels] + [hidden_channels] * (num_layers - 1) + [out_channels]
    params = []
    eps = 1e-5
    for li in range(num_layers):
        cin, cout = dims[li], dims[li + 1]
        key, kw, kb, km, kv, kg, kbe = jax.random.split(key, 7)
        bound = 1.0 / jnp.sqrt(cin)
        wt = jax.random.uniform(kw, (cin, cout), jnp.float32, -bound, bound)
        b = jax.random.uniform(kb, (1, cout), jnp.float32, -bound, bound)
        layer = {"wt": wt, "b": b}
        if li < num_layers - 1:
            # BatchNorm1d (eval): deterministic, non-trivial running stats / affine.
            run_mean = 0.1 * jax.random.normal(km, (1, cout), jnp.float32)
            run_var = 1.0 + 0.1 * jax.random.uniform(kv, (1, cout), jnp.float32)
            gamma = 1.0 + 0.05 * jax.random.normal(kg, (1, cout), jnp.float32)
            beta = 0.05 * jax.random.normal(kbe, (1, cout), jnp.float32)
            scale = gamma / jnp.sqrt(run_var + eps)
            shift = beta - run_mean * scale
            layer["bn_scale"] = scale
            layer["bn_shift"] = shift
        params.append(layer)
    return params


def make_adj_norm(key, n):
    """Dense symmetric normalized adjacency D^-1/2 (A + I) D^-1/2."""
    # TODO(synk): torch.spmm is a sparse matmul; implemented here as a dense MXU matmul.
    a = (jax.random.uniform(key, (n, n), jnp.float32) < 0.05).astype(jnp.float32)
    a = jnp.maximum(a, a.T)
    a = a + jnp.eye(n, dtype=jnp.float32)
    deg = jnp.sum(a, axis=1)
    d_inv_sqrt = 1.0 / jnp.sqrt(deg)
    return a * d_inv_sqrt[:, None] * d_inv_sqrt[None, :]


if __name__ == "__main__":
    N = 256           # number of nodes
    IN_C = 32
    HID_C = 64
    OUT_C = 16
    NUM_LAYERS = 3
    K = 3
    TM = 128          # row tile (MXU-friendly)

    key = jax.random.PRNGKey(0)
    k_x, k_adj, k_p = jax.random.split(key, 3)

    x = jax.random.normal(k_x, (N, IN_C), jnp.float32)
    adj_norm = make_adj_norm(k_adj, N)
    params = init_params(k_p, IN_C, HID_C, OUT_C, NUM_LAYERS)

    # One-time glue: pad to lane/row-dense shapes, fold biases, cast to bf16.
    x_p, adj_p, prepped = prepare_inputs(x, adj_norm, params, tm=TM, lane=128)

    fwd = jax.jit(functools.partial(appnp_forward, k=K, tm=TM, out_c=OUT_C, n_orig=N))
    out = fwd(x_p, adj_p, prepped)
    jax.block_until_ready(out)

    assert out.shape == (N, OUT_C)
    # log_softmax rows should sum (in prob space) to ~1
    assert jnp.allclose(jnp.sum(jnp.exp(out), axis=-1), 1.0, atol=1e-4)

    # Cross-check against a pure-JAX reference using identical padding/dtypes.
    ref = reference_forward(x_p, adj_p, prepped, k=K, out_c=OUT_C, n_orig=N)
    assert jnp.allclose(out, ref, atol=5e-2, rtol=5e-2)

    print("KERNEL_OK")
</pallas_src>

<mosaic_0001>
module attributes {stable_mosaic.version = 11 : i64} {
  func.func @_lin_bn_relu_kernel(%arg0: i32, %arg1: memref<128x128xbf16, #tpu.memory_space<vmem>>, %arg2: memref<128x128xbf16, #tpu.memory_space<vmem>>, %arg3: memref<1x128xf32, #tpu.memory_space<vmem>>, %arg4: memref<1x128xf32, #tpu.memory_space<vmem>>, %arg5: memref<128x128xbf16, #tpu.memory_space<vmem>>) attributes {dimension_semantics = [#tpu.dimension_semantics<parallel>], iteration_bounds = array<i64: 2>, scalar_prefetch = 0 : i64, scratch_operands = 0 : i64, tpu.core_type = #tpu.core_type<tc>, window_params = [{transform_indices = @transform_0, window_bounds = array<i64: 128, 128>}, {pipeline_mode = #tpu.pipeline_mode<synchronous>, transform_indices = @transform_1, window_bounds = array<i64: 128, 128>}, {pipeline_mode = #tpu.pipeline_mode<synchronous>, transform_indices = @transform_2, window_bounds = array<i64: 1, 128>}, {pipeline_mode = #tpu.pipeline_mode<synchronous>, transform_indices = @transform_3, window_bounds = array<i64: 1, 128>}, {transform_indices = @transform_4, window_bounds = array<i64: 128, 128>}]} {
    %c0 = arith.constant 0 : index
    %c0_0 = arith.constant 0 : index
    %0 = vector.load %arg1[%c0, %c0_0] : memref<128x128xbf16, #tpu.memory_space<vmem>>, vector<128x128xbf16>
    %c0_1 = arith.constant 0 : index
    %c0_2 = arith.constant 0 : index
    %1 = vector.load %arg2[%c0_1, %c0_2] : memref<128x128xbf16, #tpu.memory_space<vmem>>, vector<128x128xbf16>
    %cst = arith.constant dense<0.000000e+00> : vector<128x128xf32>
    %2 = tpu.matmul %0, %1, %cst {dimension_numbers = #tpu.dot_dimension_numbers<[1], [0], [0], [1], [0, 0, 1, 1], [], []>} : vector<128x128xbf16>, vector<128x128xbf16>, vector<128x128xf32> -> vector<128x128xf32>
    %c0_3 = arith.constant 0 : index
    %c0_4 = arith.constant 0 : index
    %3 = vector.load %arg3[%c0_3, %c0_4] : memref<1x128xf32, #tpu.memory_space<vmem>>, vector<1x128xf32>
    %4 = vector.broadcast %3 : vector<1x128xf32> to vector<128x128xf32>
    %5 = arith.mulf %2, %4 : vector<128x128xf32>
    %c0_5 = arith.constant 0 : index
    %c0_6 = arith.constant 0 : index
    %6 = vector.load %arg4[%c0_5, %c0_6] : memref<1x128xf32, #tpu.memory_space<vmem>>, vector<1x128xf32>
    %7 = vector.broadcast %6 : vector<1x128xf32> to vector<128x128xf32>
    %8 = arith.addf %5, %7 : vector<128x128xf32>
    %cst_7 = arith.constant 0.000000e+00 : f32
    %9 = vector.broadcast %cst_7 : f32 to vector<128x128xf32>
    %10 = arith.maximumf %8, %9 : vector<128x128xf32>
    %11 = arith.truncf %10 : vector<128x128xf32> to vector<128x128xbf16>
    %c0_8 = arith.constant 0 : index
    %c0_9 = arith.constant 0 : index
    %12 = vector.load %arg5[%c0_8, %c0_9] : memref<128x128xbf16, #tpu.memory_space<vmem>>, vector<128x128xbf16>
    tpu.vector_store %arg5[%c0_8, %c0_9], %11 {strides = array<i32>} : memref<128x128xbf16, #tpu.memory_space<vmem>>, vector<128x128xbf16>,
    return
  }
  func.func @transform_0(%arg0: i32) -> (i32, i32) {
    %c0_i32 = arith.constant 0 : i32
    %c0_i32_0 = arith.constant 0 : i32
    return %arg0, %c0_i32 : i32, i32
  }
  func.func @transform_1(%arg0: i32) -> (i32, i32) {
    %c0_i32 = arith.constant 0 : i32
    %c0_i32_0 = arith.constant 0 : i32
    %c0_i32_1 = arith.constant 0 : i32
    return %c0_i32, %c0_i32_0 : i32, i32
  }
  func.func @transform_2(%arg0: i32) -> (i32, i32) {
    %c0_i32 = arith.constant 0 : i32
    %c0_i32_0 = arith.constant 0 : i32
    %c0_i32_1 = arith.constant 0 : i32
    return %c0_i32, %c0_i32_0 : i32, i32
  }
  func.func @transform_3(%arg0: i32) -> (i32, i32) {
    %c0_i32 = arith.constant 0 : i32
    %c0_i32_0 = arith.constant 0 : i32
    %c0_i32_1 = arith.constant 0 : i32
    return %c0_i32, %c0_i32_0 : i32, i32
  }
  func.func @transform_4(%arg0: i32) -> (i32, i32) {
    %c0_i32 = arith.constant 0 : i32
    %c0_i32_0 = arith.constant 0 : i32
    return %arg0, %c0_i32 : i32, i32
  }
}

module attributes {stable_mosaic.version = 11 : i64} {
  func.func @_lin_bn_relu_kernel(%arg0: i32, %arg1: memref<128x128xbf16, #tpu.memory_space<vmem>>, %arg2: memref<128x128xbf16, #tpu.memory_space<vmem>>, %arg3: memref<1x128xf32, #tpu.memory_space<vmem>>, %arg4: memref<1x128xf32, #tpu.memory_space<vmem>>, %arg5: memref<128x128xbf16, #tpu.memory_space<vmem>>) attributes {dimension_semantics = [#tpu.dimension_semantics<parallel>], iteration_bounds = array<i64: 2>, scalar_prefetch = 0 : i64, scratch_operands = 0 : i64, tpu.core_type = #tpu.core_type<tc>, window_params = [{transform_indices = @transform_0, window_bounds = array<i64: 128, 128>}, {pipeline_mode = #tpu.pipeline_mode<synchronous>, transform_indices = @transform_1, window_bounds = array<i64: 128, 128>}, {pipeline_mode = #tpu.pipeline_mode<synchronous>, transform_indices = @transform_2, window_bounds = array<i64: 1, 128>}, {pipeline_mode = #tpu.pipeline_mode<synchronous>, transform_indices = @transform_3, window_bounds = array<i64: 1, 128>}, {transform_indices = @transform_4, window_bounds = array<i64: 128, 128>}]} {
    %c0 = arith.constant 0 : index
    %c0_0 = arith.constant 0 : index
    %0 = vector.load %arg1[%c0, %c0_0] : memref<128x128xbf16, #tpu.memory_space<vmem>>, vector<128x128xbf16>
    %c0_1 = arith.constant 0 : index
    %c0_2 = arith.constant 0 : index
    %1 = vector.load %arg2[%c0_1, %c0_2] : memref<128x128xbf16, #tpu.memory_space<vmem>>, vector<128x128xbf16>
    %cst = arith.constant dense<0.000000e+00> : vector<128x128xf32>
    %2 = tpu.matmul %0, %1, %cst {dimension_numbers = #tpu.dot_dimension_numbers<[1], [0], [0], [1], [0, 0, 1, 1], [], []>} : vector<128x128xbf16>, vector<128x128xbf16>, vector<128x128xf32> -> vector<128x128xf32>
    %c0_3 = arith.constant 0 : index
    %c0_4 = arith.constant 0 : index
    %3 = vector.load %arg3[%c0_3, %c0_4] : memref<1x128xf32, #tpu.memory_space<vmem>>, vector<1x128xf32>
    %4 = vector.broadcast %3 : vector<1x128xf32> to vector<128x128xf32>
    %5 = arith.mulf %2, %4 : vector<128x128xf32>
    %c0_5 = arith.constant 0 : index
    %c0_6 = arith.constant 0 : index
    %6 = vector.load %arg4[%c0_5, %c0_6] : memref<1x128xf32, #tpu.memory_space<vmem>>, vector<1x128xf32>
    %7 = vector.broadcast %6 : vector<1x128xf32> to vector<128x128xf32>
    %8 = arith.addf %5, %7 : vector<128x128xf32>
    %cst_7 = arith.constant 0.000000e+00 : f32
    %9 = vector.broadcast %cst_7 : f32 to vector<128x128xf32>
    %10 = arith.maximumf %8, %9 : vector<128x128xf32>
    %11 = arith.truncf %10 : vector<128x128xf32> to vector<128x128xbf16>
    %c0_8 = arith.constant 0 : index
    %c0_9 = arith.constant 0 : index
    %12 = vector.load %arg5[%c0_8, %c0_9] : memref<128x128xbf16, #tpu.memory_space<vmem>>, vector<128x128xbf16>
    tpu.vector_store %arg5[%c0_8, %c0_9], %11 {strides = array<i32>} : memref<128x128xbf16, #tpu.memory_space<vmem>>, vector<128x128xbf16>,
    return
  }
  func.func @transform_0(%arg0: i32) -> (i32, i32) {
    %c0_i32 = arith.constant 0 : i32
    %c0_i32_0 = arith.constant 0 : i32
    return %arg0, %c0_i32 : i32, i32
  }
  func.func @transform_1(%arg0: i32) -> (i32, i32) {
    %c0_i32 = arith.constant 0 : i32
    %c0_i32_0 = arith.constant 0 : i32
    %c0_i32_1 = arith.constant 0 : i32
    return %c0_i32, %c0_i32_0 : i32, i32
  }
  func.func @transform_2(%arg0: i32) -> (i32, i32) {
    %c0_i32 = arith.constant 0 : i32
    %c0_i32_0 = arith.constant 0 : i32
    %c0_i32_1 = arith.constant 0 : i32
    return %c0_i32, %c0_i32_0 : i32, i32
  }
  func.func @transform_3(%arg0: i32) -> (i32, i32) {
    %c0_i32 = arith.constant 0 : i32
    %c0_i32_0 = arith.constant 0 : i32
    %c0_i32_1 = arith.constant 0 : i32
    return %c0_i32, %c0_i32_0 : i32, i32
  }
  func.func @transform_4(%arg0: i32) -> (i32, i32) {
    %c0_i32 = arith.constant 0 : i32
    %c0_i32_0 = arith.constant 0 : i32
    return %arg0, %c0_i32 : i32, i32
  }
}

module attributes {stable_mosaic.version = 11 : i64} {
  func.func @_prop_logsoftmax_kernel(%arg0: memref<256x128xbf16, #tpu.memory_space<vmem>>, %arg1: memref<128x128xbf16, #tpu.memory_space<vmem>>, %arg2: memref<1x128xf32, #tpu.memory_space<vmem>>, %arg3: memref<256x256xbf16, #tpu.memory_space<vmem>>, %arg4: memref<256x128xf32, #tpu.memory_space<vmem>>) attributes {dimension_semantics = [], scalar_prefetch = 0 : i64, scratch_operands = 0 : i64, tpu.core_type = #tpu.core_type<tc>} {
    %c0 = arith.constant 0 : index
    %c0_0 = arith.constant 0 : index
    %0 = vector.load %arg0[%c0, %c0_0] : memref<256x128xbf16, #tpu.memory_space<vmem>>, vector<256x128xbf16>
    %c0_1 = arith.constant 0 : index
    %c0_2 = arith.constant 0 : index
    %1 = vector.load %arg1[%c0_1, %c0_2] : memref<128x128xbf16, #tpu.memory_space<vmem>>, vector<128x128xbf16>
    %cst = arith.constant dense<0.000000e+00> : vector<256x128xf32>
    %2 = tpu.matmul %0, %1, %cst {dimension_numbers = #tpu.dot_dimension_numbers<[1], [0], [0], [1], [0, 0, 1, 1], [], []>} : vector<256x128xbf16>, vector<128x128xbf16>, vector<256x128xf32> -> vector<256x128xf32>
    %c0_3 = arith.constant 0 : index
    %c0_4 = arith.constant 0 : index
    %3 = vector.load %arg2[%c0_3, %c0_4] : memref<1x128xf32, #tpu.memory_space<vmem>>, vector<1x128xf32>
    %4 = vector.broadcast %3 : vector<1x128xf32> to vector<256x128xf32>
    %5 = arith.addf %2, %4 : vector<256x128xf32>
    %c0_5 = arith.constant 0 : index
    %c0_6 = arith.constant 0 : index
    %6 = vector.load %arg3[%c0_5, %c0_6] : memref<256x256xbf16, #tpu.memory_space<vmem>>, vector<256x256xbf16>
    %cst_7 = arith.constant 5.000000e-01 : f32
    %7 = vector.broadcast %cst_7 : f32 to vector<256x128xf32>
    %8 = arith.mulf %7, %5 : vector<256x128xf32>
    %c0_i32 = arith.constant 0 : i32
    %9 = arith.truncf %5 : vector<256x128xf32> to vector<256x128xbf16>
    %cst_8 = arith.constant dense<0.000000e+00> : vector<256x128xf32>
    %10 = tpu.matmul %6, %9, %cst_8 {dimension_numbers = #tpu.dot_dimension_numbers<[1], [0], [0], [1], [0, 0, 1, 1], [], []>} : vector<256x256xbf16>, vector<256x128xbf16>, vector<256x128xf32> -> vector<256x128xf32>
    %cst_9 = arith.constant 5.000000e-01 : f32
    %11 = vector.broadcast %cst_9 : f32 to vector<256x128xf32>
    %12 = arith.mulf %11, %10 : vector<256x128xf32>
    %13 = arith.addf %12, %8 : vector<256x128xf32>
    %c1_i32 = arith.constant 1 : i32
    %14 = arith.truncf %13 : vector<256x128xf32> to vector<256x128xbf16>
    %cst_10 = arith.constant dense<0.000000e+00> : vector<256x128xf32>
    %15 = tpu.matmul %6, %14, %cst_10 {dimension_numbers = #tpu.dot_dimension_numbers<[1], [0], [0], [1], [0, 0, 1, 1], [], []>} : vector<256x256xbf16>, vector<256x128xbf16>, vector<256x128xf32> -> vector<256x128xf32>
    %cst_11 = arith.constant 5.000000e-01 : f32
    %16 = vector.broadcast %cst_11 : f32 to vector<256x128xf32>
    %17 = arith.mulf %16, %15 : vector<256x128xf32>
    %18 = arith.addf %17, %8 : vector<256x128xf32>
    %c2_i32 = arith.constant 2 : i32
    %19 = arith.truncf %18 : vector<256x128xf32> to vector<256x128xbf16>
    %cst_12 = arith.constant dense<0.000000e+00> : vector<256x128xf32>
    %20 = tpu.matmul %6, %19, %cst_12 {dimension_numbers = #tpu.dot_dimension_numbers<[1], [0], [0], [1], [0, 0, 1, 1], [], []>} : vector<256x256xbf16>, vector<256x128xbf16>, vector<256x128xf32> -> vector<256x128xf32>
    %cst_13 = arith.constant 5.000000e-01 : f32
    %21 = vector.broadcast %cst_13 : f32 to vector<256x128xf32>
    %22 = arith.mulf %21, %20 : vector<256x128xf32>
    %23 = arith.addf %22, %8 : vector<256x128xf32>
    %24 = tpu.iota {dimensions = array<i32: 1>} : vector<256x128xi32>
    %c16_i32 = arith.constant 16 : i32
    %25 = vector.broadcast %c16_i32 : i32 to vector<256x128xi32>
    %26 = arith.cmpi slt, %24, %25 : vector<256x128xi32>
    %cst_14 = arith.constant -1.000000e+30 : f32
    %27 = vector.broadcast %cst_14 : f32 to vector<256x128xf32>
    %28 = arith.select %26, %23, %27 : vector<256x128xi1>, vector<256x128xf32>
    %cst_15 = arith.constant dense<0xFF800000> : vector<256xf32>
    %29 = vector.multi_reduction <maximumf>, %28, %cst_15 [1] : vector<256x128xf32> to vector<256xf32>
    %30 = vector.shape_cast %29 : vector<256xf32> to vector<256x1xf32>
    %31 = vector.broadcast %30 : vector<256x1xf32> to vector<256x128xf32>
    %32 = arith.subf %23, %31 : vector<256x128xf32>
    %33 = math.exp %32 : vector<256x128xf32>
    %cst_16 = arith.constant 0.000000e+00 : f32
    %34 = vector.broadcast %cst_16 : f32 to vector<256x128xf32>
    %35 = arith.select %26, %33, %34 : vector<256x128xi1>, vector<256x128xf32>
    %cst_17 = arith.constant dense<0.000000e+00> : vector<256xf32>
    %36 = vector.multi_reduction <add>, %35, %cst_17 [1] : vector<256x128xf32> to vector<256xf32>
    %37 = vector.shape_cast %36 : vector<256xf32> to vector<256x1xf32>
    %38 = math.log %37 : vector<256x1xf32>
    %39 = arith.addf %38, %30 : vector<256x1xf32>
    %40 = vector.broadcast %39 : vector<256x1xf32> to vector<256x128xf32>
    %41 = arith.subf %23, %40 : vector<256x128xf32>
    %c0_18 = arith.constant 0 : index
    %c0_19 = arith.constant 0 : index
    %42 = vector.load %arg4[%c0_18, %c0_19] : memref<256x128xf32, #tpu.memory_space<vmem>>, vector<256x128xf32>
    tpu.vector_store %arg4[%c0_18, %c0_19], %41 {strides = array<i32>} : memref<256x128xf32, #tpu.memory_space<vmem>>, vector<256x128xf32>,
    return
  }
}

</mosaic_0001>

<llo_original>
// kernel: appnp_forward.3
$region0: #{appnp_forward.3}
  #allocation0 [shape = 'u32[]', space=smem, size = 0x4, offset = 0x4, fixed_abs, tag = 'smem constant byte address 0x4 - core index']
  #allocation1 [shape = 'u32[144,128]{1,0:T(1,128)}', space=vmem, size = 0x12000, scoped, tag = 'internal scratch']
  %s0 = inlined_call_operand.hbm [shape: bf16[256,128], index: 0, kind: input, shape index: {}]
  %s1 = inlined_call_operand.hbm [shape: bf16[128,128], index: 1, kind: input, shape index: {}]
  %s2 = inlined_call_operand.vmem [shape: f32[1,128], index: 2, kind: input, shape index: {}]
  %s3 = inlined_call_operand.vmem [shape: f32[1,128], index: 3, kind: input, shape index: {}]
  %s4 = inlined_call_operand.vmem [shape: bf16[256,128], index: 4, kind: output, shape index: {}]
  %s5 = sld [smem:[#allocation0]]
  $region57: #{appnp_forward.3} parent=0
    _
  %s7 = ssub.s32 1, %s5
  %s8 = scalar_select 0, %s7, %s5
  $region1: #{appnp_forward.3} parent=0
    #allocation2 [shape = 'u8[65536]{0}', space=vmem, size = 0x10000, scoped, tag = 'input window, operand 0']
    #allocation3 [shape = 's32[2]{0}', space=sflag, size = 0x8, scoped, tag = 'scoped memory for appnp_forward.3']
    #allocation4 [shape = 'u8[32768]{0}', space=vmem, size = 0x8000, scoped, tag = 'input window, operand 1, single buffered']
    #allocation5 [shape = 's32[1]{0}', space=sflag, size = 0x4, scoped, tag = 'scoped memory for appnp_forward.3']
    %9 = vsyncpa [#allocation3], 0
    %s10 = scalar_lea.sflag [#allocation3], 1
    %11 = vsyncpa %s10, 0
    %12 = vsyncpa [#allocation5], 0
    loop: start=0, step=1, limit=4
    $region2: #{appnp_forward.3} parent=1 // loop_pre_header
      _
    $region3: #{appnp_forward.3} parent=1 // loop_header
      %s14 = sphi 0, %s18
      %p15 = scmp.ge.s32.totalorder %s14, 4
      %s24 = sphi 0, %s26
      %s27 = sphi 0, %s24
      %s28 = sphi 0, %s27
      %s44 = sphi 0, %s28
      %s48 = sphi 0, %s48
      %s50 = sphi 0, %s48
      %s51 = sphi 0, %s50
      %s65 = sphi 0, %s51
      %s69 = sphi 0, %s69
      %s71 = sphi 0, %s69
      %s72 = sphi 0, %s71
      %s86 = sphi 0, %s72
      %s90 = sphi 0, %s90
      %s92 = sphi 0, %s90
      %s93 = sphi 0, %s92
      %s107 = sphi 0, %s93
      %s113 = sphi 0, %s115
      %s116 = sphi 0, %s113
      %s117 = sphi 0, %s116
      %s133 = sphi 0, %s117
    $region4: #{appnp_forward.3} parent=1 // loop_header_branch
      %17 = sbr.rel (%p15) target = $region8
    $region5: #{appnp_forward.3} parent=1 // loop_body
      %s19 = ssub.s32 %s14, 1
      %s20 = ssub.s32 %s14, 2
      %s21 = sadd.s32 %s14, 1
      %s22 = ssub.s32 %s14, %s21
      %p23 = scmp.eq.s32.totalorder %s22, 0
      %s25 = sadd.s32 %s24, 1
      %s26 = scalar_select %p23, %s24, %s25
      %p29 = pneg %p23
      %p30 = scmp.eq.s32.totalorder %s14, 1
      %p31 = por %p29, %p30
      %p32 = scmp.ne.s32.totalorder %s24, %s27
      %p33 = scmp.eq.s32.totalorder %s14, 0
      %p34 = por %p32, %p33
      %p35 = scmp.ne.s32.totalorder %s24, %s27
      %p36 = scmp.eq.s32.totalorder %s19, 1
      %p37 = por %p35, %p36
      %p38 = scmp.ne.s32.totalorder %s27, %s28
      %p39 = scmp.eq.s32.totalorder %s19, 0
      %p40 = por %p38, %p39
      %p41 = scmp.ne.s32.totalorder %s27, %s28
      %p42 = scmp.eq.s32.totalorder %s20, 1
      %p43 = por %p41, %p42
      %p45 = scmp.ne.s32.totalorder %s28, %s44
      %p46 = scmp.eq.s32.totalorder %s20, 0
      %p47 = por %p45, %p46
      %s49 = sadd.s32 %s48, 1
      %p52 = scmp.eq.s32.totalorder %s14, 1
      %p53 = scmp.ne.s32.totalorder %s48, %s50
      %p54 = scmp.eq.s32.totalorder %s14, 0
      %p55 = por %p53, %p54
      %p56 = scmp.ne.s32.totalorder %s48, %s50
      %p57 = scmp.eq.s32.totalorder %s19, 1
      %p58 = por %p56, %p57
      %p59 = scmp.ne.s32.totalorder %s50, %s51
      %p60 = scmp.eq.s32.totalorder %s19, 0
      %p61 = por %p59, %p60
      %p62 = scmp.ne.s32.totalorder %s50, %s51
      %p63 = scmp.eq.s32.totalorder %s20, 1
      %p64 = por %p62, %p63
      %p66 = scmp.ne.s32.totalorder %s51, %s65
      %p67 = scmp.eq.s32.totalorder %s20, 0
      %p68 = por %p66, %p67
      %s70 = sadd.s32 %s69, 1
      %p73 = scmp.eq.s32.totalorder %s14, 1
      %p74 = scmp.ne.s32.totalorder %s69, %s71
      %p75 = scmp.eq.s32.totalorder %s14, 0
      %p76 = por %p74, %p75
      %p77 = scmp.ne.s32.totalorder %s69, %s71
      %p78 = scmp.eq.s32.totalorder %s19, 1
      %p79 = por %p77, %p78
      %p80 = scmp.ne.s32.totalorder %s71, %s72
      %p81 = scmp.eq.s32.totalorder %s19, 0
      %p82 = por %p80, %p81
      %p83 = scmp.ne.s32.totalorder %s71, %s72
      %p84 = scmp.eq.s32.totalorder %s20, 1
      %p85 = por %p83, %p84
      %p87 = scmp.ne.s32.totalorder %s72, %s86
      %p88 = scmp.eq.s32.totalorder %s20, 0
      %p89 = por %p87, %p88
      %s91 = sadd.s32 %s90, 1
      %p94 = scmp.eq.s32.totalorder %s14, 1
      %p95 = scmp.ne.s32.totalorder %s90, %s92
      %p96 = scmp.eq.s32.totalorder %s14, 0
      %p97 = por %p95, %p96
      %p98 = scmp.ne.s32.totalorder %s90, %s92
      %p99 = scmp.eq.s32.totalorder %s19, 1
      %p100 = por %p98, %p99
      %p101 = scmp.ne.s32.totalorder %s92, %s93
      %p102 = scmp.eq.s32.totalorder %s19, 0
      %p103 = por %p101, %p102
      %p104 = scmp.ne.s32.totalorder %s92, %s93
      %p105 = scmp.eq.s32.totalorder %s20, 1
      %p106 = por %p104, %p105
      %p108 = scmp.ne.s32.totalorder %s93, %s107
      %p109 = scmp.eq.s32.totalorder %s20, 0
      %p110 = por %p108, %p109
      %s111 = ssub.s32 %s14, %s21
      %p112 = scmp.eq.s32.totalorder %s111, 0
      %s114 = sadd.s32 %s113, 1
      %s115 = scalar_select %p112, %s113, %s114
      %p118 = pneg %p112
      %p119 = scmp.eq.s32.totalorder %s14, 1
      %p120 = por %p118, %p119
      %p121 = scmp.ne.s32.totalorder %s113, %s116
      %p122 = scmp.eq.s32.totalorder %s14, 0
      %p123 = por %p121, %p122
      %p124 = scmp.ne.s32.totalorder %s113, %s116
      %p125 = scmp.eq.s32.totalorder %s19, 1
      %p126 = por %p124, %p125
      %p127 = scmp.ne.s32.totalorder %s116, %s117
      %p128 = scmp.eq.s32.totalorder %s19, 0
      %p129 = por %p127, %p128
      %p130 = scmp.ne.s32.totalorder %s116, %s117
      %p131 = scmp.eq.s32.totalorder %s20, 1
      %p132 = por %p130, %p131
      %p134 = scmp.ne.s32.totalorder %s117, %s133
      %p135 = scmp.eq.s32.totalorder %s20, 0
      %p136 = por %p134, %p135
      %p137 = scmp.le.s32.totalorder 1, %s14
      %p138 = scmp.lt.s32.totalorder %s14, 3
      %p139 = pnand %p137, %p138
      %p140 = pneg %p139
      // Predicated region
      $region9: #{appnp_forward.3} parent=5 // pred_check
        _
      $region10: #{appnp_forward.3} parent=5 // pred_check_branch
        %142 = sbr.rel (%p139) target = $region12
      $region11: #{appnp_forward.3} parent=5 // pred_region
        %s143 = ssub.s32 %s14, 1
        // Predicated region
        $region13: #{appnp_forward.3} parent=11 // pred_check
          %p144 = pneg %p61
        $region14: #{appnp_forward.3} parent=11 // pred_check_branch
          %146 = sbr.rel (%p144) target = $region16
        $region15: #{appnp_forward.3} parent=11 // pred_region
          %s148 = ssub.s32 1024, 1024
          %149 = vsyncadd [#allocation5], %s148
          %s150 = sshll.u32 [#allocation4], 4
          %s151 = int_to_ptr.vmem [resolvable:$true] %s150
          %156 = dma.hbm_to_vmem [thread:$0]  %s1, 1024, %s151, [#allocation5], 64, 64, 4
        $region16: #{appnp_forward.3} parent=11 // pred_fallthru
          _
        // Predicated region
        $region17: #{appnp_forward.3} parent=11 // pred_check
          %p157 = pneg %p82
        $region18: #{appnp_forward.3} parent=11 // pred_check_branch
          %159 = sbr.rel (%p157) target = $region20
        $region19: #{appnp_forward.3} parent=11 // pred_region
          _
        $region20: #{appnp_forward.3} parent=11 // pred_fallthru
          _
        // Predicated region
        $region21: #{appnp_forward.3} parent=11 // pred_check
          %p160 = pneg %p103
        $region22: #{appnp_forward.3} parent=11 // pred_check_branch
          %162 = sbr.rel (%p160) target = $region24
        $region23: #{appnp_forward.3} parent=11 // pred_region
          _
        $region24: #{appnp_forward.3} parent=11 // pred_fallthru
          _
      $region12: #{appnp_forward.3} parent=5 // pred_fallthru
        _
      %p163 = scmp.lt.s32.totalorder %s14, 2
      // Predicated region
      $region25: #{appnp_forward.3} parent=5 // pred_check
        %p164 = pneg %p163
      $region26: #{appnp_forward.3} parent=5 // pred_check_branch
        %166 = sbr.rel (%p164) target = $region28
      $region27: #{appnp_forward.3} parent=5 // pred_region
        // Predicated region
        $region29: #{appnp_forward.3} parent=27 // pred_check
          %p167 = pneg %p34
        $region30: #{appnp_forward.3} parent=27 // pred_check_branch
          %169 = sbr.rel (%p167) target = $region32
        $region31: #{appnp_forward.3} parent=27 // pred_region
          %s170 = sand.u32 %s24, 1
          %s171 = scalar_lea.sflag [#allocation3], %s170
          %s172 = sand.u32 %s24, 1
          %s173 = smul.addr %s172, 64
          %s174 = scalar_lea.vmem [#allocation2], %s173
          %s175 = smul.u32 16, %s14
          %s177 = ssub.s32 1024, 1024
          %178 = vsyncadd %s171, %s177
          %s179 = smul.addr %s175, 64
          %s180 = scalar_lea.hbm %s0, %s179
          %s181 = sshll.u32 %s174, 4
          %s182 = int_to_ptr.vmem [resolvable:$true] %s181
          %187 = dma.hbm_to_vmem [thread:$0]  %s180, 1024, %s182, %s171, 64, 64, 4
        $region32: #{appnp_forward.3} parent=27 // pred_fallthru
          _
      $region28: #{appnp_forward.3} parent=5 // pred_fallthru
        _
      %p188 = scmp.le.s32.totalorder 1, %s14
      %p189 = scmp.lt.s32.totalorder %s14, 3
      %p190 = pnand %p188, %p189
      %p191 = pneg %p190
      // Predicated region
      $region33: #{appnp_forward.3} parent=5 // pred_check
        _
      $region34: #{appnp_forward.3} parent=5 // pred_check_branch
        %193 = sbr.rel (%p190) target = $region36
      $region35: #{appnp_forward.3} parent=5 // pred_region
        %s194 = ssub.s32 %s14, 1
        %s195 = sand.u32 %s27, 1
        %s196 = scalar_lea.sflag [#allocation3], %s195
        %s197 = sand.u32 %s27, 1
        %s198 = smul.addr %s197, 64
        %s199 = scalar_lea.vmem [#allocation2], %s198
        // Predicated region
        $region37: #{appnp_forward.3} parent=35 // pred_check
          %p200 = pneg %p40
        $region38: #{appnp_forward.3} parent=35 // pred_check_branch
          %202 = sbr.rel (%p200) target = $region40
        $region39: #{appnp_forward.3} parent=35 // pred_region
          %203 = dma.done %s196, 1024
        $region40: #{appnp_forward.3} parent=35 // pred_fallthru
          _
        // Predicated region
        $region41: #{appnp_forward.3} parent=35 // pred_check
          %p204 = pneg %p61
        $region42: #{appnp_forward.3} parent=35 // pred_check_branch
          %206 = sbr.rel (%p204) target = $region44
        $region43: #{appnp_forward.3} parent=35 // pred_region
          %207 = dma.done [#allocation5], 1024
        $region44: #{appnp_forward.3} parent=35 // pred_fallthru
          _
        %s208 = sand.u32 %s27, 1
        %s209 = scalar_lea.sflag [#allocation3], %s208
        %s210 = sand.u32 %s27, 1
        %s211 = smul.addr %s210, 64
        %s212 = scalar_lea.vmem [#allocation2], %s211
        %p213 = pneg %p40
        %p214 = pneg %p37
        %p215 = pneg %p61
        %p216 = pneg %p58
        %p217 = pneg %p82
        %p218 = pneg %p79
        %p219 = pneg %p103
        %p220 = pneg %p100
        %p221 = pneg %p129
        %p222 = pneg %p126
        %s223 = smul.u32 16, %s19
        %p224 = scmp.lt.s32.totalorder %s223, 31
        %s225 = scalar_select %p224, %s223, 31
        %s226 = smul.addr %s225, 4
        %s227 = scalar_lea.vmem %s4, %s226
        %s228 = smul.u32 16, %s19
        %s229 = smul.u32 16, %s19
        %p230 = scmp.lt.s32.totalorder %s229, 31
        %s231 = scalar_select %p230, %s229, 31
        %s232 = smul.addr %s231, 4
        %s233 = scalar_lea.vmem %s4, %s232
        %s234 = smul.u32 16, %s19
        %v236 = vld [vmem:[%s199] sm:$0xf]
        %v237 = vld [vmem:[%s199 + $0x4] sm:$0xf]
        %v238 = vld [vmem:[%s199 + $0x8] sm:$0xf]
        %v239 = vld [vmem:[%s199 + $0xc] sm:$0xf]
        %v240 = vld [vmem:[%s199 + $0x10] sm:$0xf]
        %v241 = vld [vmem:[%s199 + $0x14] sm:$0xf]
        %v242 = vld [vmem:[%s199 + $0x18] sm:$0xf]
        %v243 = vld [vmem:[%s199 + $0x1c] sm:$0xf]
        %v244 = vld [vmem:[%s199 + $0x20] sm:$0xf]
        %v245 = vld [vmem:[%s199 + $0x24] sm:$0xf]
        %v246 = vld [vmem:[%s199 + $0x28] sm:$0xf]
        %v247 = vld [vmem:[%s199 + $0x2c] sm:$0xf]
        %v248 = vld [vmem:[%s199 + $0x30] sm:$0xf]
        %v249 = vld [vmem:[%s199 + $0x34] sm:$0xf]
        %v250 = vld [vmem:[%s199 + $0x38] sm:$0xf]
        %v251 = vld [vmem:[%s199 + $0x3c] sm:$0xf]
        %v252 = vld [vmem:[#allocation4] sm:$0xf]
        %v253 = vld [vmem:[#allocation4 + $0x4] sm:$0xf]
        %v254 = vld [vmem:[#allocation4 + $0x8] sm:$0xf]
        %v255 = vld [vmem:[#allocation4 + $0xc] sm:$0xf]
        %v256 = vld [vmem:[#allocation4 + $0x10] sm:$0xf]
        %v257 = vld [vmem:[#allocation4 + $0x14] sm:$0xf]
        %v258 = vld [vmem:[#allocation4 + $0x18] sm:$0xf]
        %v259 = vld [vmem:[#allocation4 + $0x1c] sm:$0xf]
        %v260 = vld [vmem:[#allocation4 + $0x20] sm:$0xf]
        %v261 = vld [vmem:[#allocation4 + $0x24] sm:$0xf]
        %v262 = vld [vmem:[#allocation4 + $0x28] sm:$0xf]
        %v263 = vld [vmem:[#allocation4 + $0x2c] sm:$0xf]
        %v264 = vld [vmem:[#allocation4 + $0x30] sm:$0xf]
        %v265 = vld [vmem:[#allocation4 + $0x34] sm:$0xf]
        %v266 = vld [vmem:[#allocation4 + $0x38] sm:$0xf]
        %v267 = vld [vmem:[#allocation4 + $0x3c] sm:$0xf]
        %v284 = vunpack.c.l.b16 %v236
        %v285 = vunpack.c.l.b16 %v237
        %v286 = vunpack.c.l.b16 %v238
        %v287 = vunpack.c.l.b16 %v239
        %v288 = vunpack.c.l.b16 %v240
        %v289 = vunpack.c.l.b16 %v241
        %v290 = vunpack.c.l.b16 %v242
        %v291 = vunpack.c.l.b16 %v243
        %v292 = vunpack.c.l.b16 %v244
        %v293 = vunpack.c.l.b16 %v245
        %v294 = vunpack.c.l.b16 %v246
        %v295 = vunpack.c.l.b16 %v247
        %v296 = vunpack.c.l.b16 %v248
        %v297 = vunpack.c.l.b16 %v249
        %v298 = vunpack.c.l.b16 %v250
        %v299 = vunpack.c.l.b16 %v251
        %v300 = vpack.c.b16 %v285, %v284
        %v301 = vpack.c.b16 %v287, %v286
        %v302 = vpack.c.b16 %v289, %v288
        %v303 = vpack.c.b16 %v291, %v290
        %v304 = vpack.c.b16 %v293, %v292
        %v305 = vpack.c.b16 %v295, %v294
        %v306 = vpack.c.b16 %v297, %v296
        %v307 = vpack.c.b16 %v299, %v298
        %v332 = vunpack.c.l.b16 %v252
        %v333 = vunpack.c.l.b16 %v253
        %v334 = vunpack.c.l.b16 %v254
        %v335 = vunpack.c.l.b16 %v255
        %v336 = vunpack.c.l.b16 %v256
        %v337 = vunpack.c.l.b16 %v257
        %v338 = vunpack.c.l.b16 %v258
        %v339 = vunpack.c.l.b16 %v259
        %v340 = vunpack.c.l.b16 %v260
        %v341 = vunpack.c.l.b16 %v261
        %v342 = vunpack.c.l.b16 %v262
        %v343 = vunpack.c.l.b16 %v263
        %v344 = vunpack.c.l.b16 %v264
        %v345 = vunpack.c.l.b16 %v265
        %v346 = vunpack.c.l.b16 %v266
        %v347 = vunpack.c.l.b16 %v267
        %v348 = vpack.c.b16 %v333, %v332
        %v349 = vpack.c.b16 %v335, %v334
        %v350 = vpack.c.b16 %v337, %v336
        %v351 = vpack.c.b16 %v339, %v338
        %v352 = vpack.c.b16 %v341, %v340
        %v353 = vpack.c.b16 %v343, %v342
        %v354 = vpack.c.b16 %v345, %v344
        %v355 = vpack.c.b16 %v347, %v346
        %364 = vmatprep.subr.bf16.mxu0 0
        %365 = vmatpush1.bf16.msra.mxu0 %v348
        %366 = vmatprep.subr.bf16.mxu0 0
        %367 = vmatpush1.bf16.msra.mxu0 %v349
        %368 = vmatprep.subr.bf16.mxu0 0
        %369 = vmatpush1.bf16.msra.mxu0 %v350
        %370 = vmatprep.subr.bf16.mxu0 0
        %371 = vmatpush1.bf16.msra.mxu0 %v351
        %372 = vmatprep.subr.bf16.mxu0 0
        %373 = vmatpush1.bf16.msra.mxu0 %v352
        %374 = vmatprep.subr.bf16.mxu0 0
        %375 = vmatpush1.bf16.msra.mxu0 %v353
        %376 = vmatprep.subr.bf16.mxu0 0
        %377 = vmatpush1.bf16.msra.mxu0 %v354
        %378 = vmatprep.subr.bf16.mxu0 0
        %379 = vmatpush1.bf16.msra.mxu0 %v355
        %380 = vmatprep.subr.bf16.mxu0 0
        %381 = vmatpush1.bf16.msra.mxu0 0
        %382 = vmatprep.subr.bf16.mxu0 0
        %383 = vmatpush1.bf16.msra.mxu0 0
        %384 = vmatprep.subr.bf16.mxu0 0
        %385 = vmatpush1.bf16.msra.mxu0 0
        %386 = vmatprep.subr.bf16.mxu0 0
        %387 = vmatpush1.bf16.msra.mxu0 0
        %388 = vmatprep.subr.bf16.mxu0 0
        %389 = vmatpush1.bf16.msra.mxu0 0
        %390 = vmatprep.subr.bf16.mxu0 0
        %391 = vmatpush1.bf16.msra.mxu0 0
        %392 = vmatprep.subr.bf16.mxu0 0
        %393 = vmatpush1.bf16.msra.mxu0 0
        %394 = vmatprep.subr.bf16.mxu0 0
        %395 = vmatpush1.bf16.msra.mxu0 0
        %396 = vmatprep.mubr.bf16.mxu0 0
        %397 = vmatmul.mubr.bf16.gmra.mrb[0].mxu0 %v300
        %v398 = vpop.f32.mrb[0].mxu0
        %v399 = vadd.f32 0.0, %v398
        %v400 = vpop.f32.mrb[0].mxu0
        %v401 = vpop.f32.mrb[0].mxu0
        %v402 = vadd.f32 0.0, %v401
        %v403 = vpop.f32.mrb[0].mxu0
        %404 = vmatprep.mubr.bf16.mxu0 0
        %405 = vmatmul.mubr.bf16.gmra.mrb[0].mxu0 %v301
        %v406 = vpop.f32.mrb[0].mxu0
        %v407 = vadd.f32 0.0, %v406
        %v408 = vpop.f32.mrb[0].mxu0
        %v409 = vpop.f32.mrb[0].mxu0
        %v410 = vadd.f32 0.0, %v409
        %v411 = vpop.f32.mrb[0].mxu0
        %412 = vmatprep.mubr.bf16.mxu0 0
        %413 = vmatmul.mubr.bf16.gmra.mrb[0].mxu0 %v302
        %v414 = vpop.f32.mrb[0].mxu0
        %v415 = vadd.f32 0.0, %v414
        %v416 = vpop.f32.mrb[0].mxu0
        %v417 = vpop.f32.mrb[0].mxu0
        %v418 = vadd.f32 0.0, %v417
        %v419 = vpop.f32.mrb[0].mxu0
        %420 = vmatprep.mubr.bf16.mxu0 0
        %421 = vmatmul.mubr.bf16.gmra.mrb[0].mxu0 %v303
        %v422 = vpop.f32.mrb[0].mxu0
        %v423 = vadd.f32 0.0, %v422
        %v424 = vpop.f32.mrb[0].mxu0
        %v425 = vpop.f32.mrb[0].mxu0
        %v426 = vadd.f32 0.0, %v425
        %v427 = vpop.f32.mrb[0].mxu0
        %428 = vmatprep.mubr.bf16.mxu0 0
        %429 = vmatmul.mubr.bf16.gmra.mrb[0].mxu0 %v304
        %v430 = vpop.f32.mrb[0].mxu0
        %v431 = vadd.f32 0.0, %v430
        %v432 = vpop.f32.mrb[0].mxu0
        %v433 = vpop.f32.mrb[0].mxu0
        %v434 = vadd.f32 0.0, %v433
        %v435 = vpop.f32.mrb[0].mxu0
        %436 = vmatprep.mubr.bf16.mxu0 0
        %437 = vmatmul.mubr.bf16.gmra.mrb[0].mxu0 %v305
        %v438 = vpop.f32.mrb[0].mxu0
        %v439 = vadd.f32 0.0, %v438
        %v440 = vpop.f32.mrb[0].mxu0
        %v441 = vpop.f32.mrb[0].mxu0
        %v442 = vadd.f32 0.0, %v441
        %v443 = vpop.f32.mrb[0].mxu0
        %444 = vmatprep.mubr.bf16.mxu0 0
        %445 = vmatmul.mubr.bf16.gmra.mrb[0].mxu0 %v306
        %v446 = vpop.f32.mrb[0].mxu0
        %v447 = vadd.f32 0.0, %v446
        %v448 = vpop.f32.mrb[0].mxu0
        %v449 = vpop.f32.mrb[0].mxu0
        %v450 = vadd.f32 0.0, %v449
        %v451 = vpop.f32.mrb[0].mxu0
        %452 = vmatprep.mubr.bf16.mxu0 0
        %453 = vmatmul.mubr.bf16.gmra.mrb[0].mxu0 %v307
        %v454 = vpop.f32.mrb[0].mxu0
        %v455 = vadd.f32 0.0, %v454
        %v456 = vpop.f32.mrb[0].mxu0
        %v457 = vpop.f32.mrb[0].mxu0
        %v458 = vadd.f32 0.0, %v457
        %v459 = vpop.f32.mrb[0].mxu0
        %460 = vdwg.mxu0
        %v461 = vld [vmem:[%s2] sm:$0x1]
        %v463 = vlaneseq
        %v464 = vshrl.u32 %v463, 7
        %v465 = vsub.s32 0, %v464
        %v466 = vrot.slane %v461, %v465
        %v468 = vmul.f32 %v399, %v466
        %v469 = vmul.f32 %v402, %v466
        %v470 = vmul.f32 %v407, %v466
        %v471 = vmul.f32 %v410, %v466
        %v472 = vmul.f32 %v415, %v466
        %v473 = vmul.f32 %v418, %v466
        %v474 = vmul.f32 %v423, %v466
        %v475 = vmul.f32 %v426, %v466
        %v476 = vmul.f32 %v431, %v466
        %v477 = vmul.f32 %v434, %v466
        %v478 = vmul.f32 %v439, %v466
        %v479 = vmul.f32 %v442, %v466
        %v480 = vmul.f32 %v447, %v466
        %v481 = vmul.f32 %v450, %v466
        %v482 = vmul.f32 %v455, %v466
        %v483 = vmul.f32 %v458, %v466
        %v484 = vld [vmem:[%s3] sm:$0x1]
        %v486 = vlaneseq
        %v487 = vshrl.u32 %v486, 7
        %v488 = vsub.s32 0, %v487
        %v489 = vrot.slane %v484, %v488
        %v491 = vadd.f32 %v468, %v489
        %v492 = vadd.f32 %v469, %v489
        %v493 = vadd.f32 %v470, %v489
        %v494 = vadd.f32 %v471, %v489
        %v495 = vadd.f32 %v472, %v489
        %v496 = vadd.f32 %v473, %v489
        %v497 = vadd.f32 %v474, %v489
        %v498 = vadd.f32 %v475, %v489
        %v499 = vadd.f32 %v476, %v489
        %v500 = vadd.f32 %v477, %v489
        %v501 = vadd.f32 %v478, %v489
        %v502 = vadd.f32 %v479, %v489
        %v503 = vadd.f32 %v480, %v489
        %v504 = vadd.f32 %v481, %v489
        %v505 = vadd.f32 %v482, %v489
        %v506 = vadd.f32 %v483, %v489
        %v507 = vmax.f32 %v491, 0.0
        %v508 = vmax.f32 %v492, 0.0
        %v509 = vmax.f32 %v493, 0.0
        %v510 = vmax.f32 %v494, 0.0
        %v511 = vmax.f32 %v495, 0.0
        %v512 = vmax.f32 %v496, 0.0
        %v513 = vmax.f32 %v497, 0.0
        %v514 = vmax.f32 %v498, 0.0
        %v515 = vmax.f32 %v499, 0.0
        %v516 = vmax.f32 %v500, 0.0
        %v517 = vmax.f32 %v501, 0.0
        %v518 = vmax.f32 %v502, 0.0
        %v519 = vmax.f32 %v503, 0.0
        %v520 = vmax.f32 %v504, 0.0
        %v521 = vmax.f32 %v505, 0.0
        %v522 = vmax.f32 %v506, 0.0
        %v523 = vpack.c.bf16 %v508, %v507
        %v524 = vpack.c.bf16 %v510, %v509
        %v525 = vpack.c.bf16 %v512, %v511
        %v526 = vpack.c.bf16 %v514, %v513
        %v527 = vpack.c.bf16 %v516, %v515
        %v528 = vpack.c.bf16 %v518, %v517
        %v529 = vpack.c.bf16 %v520, %v519
        %v530 = vpack.c.bf16 %v522, %v521
        %v539 = vunpack.c.l.b16 %v523
        %v540 = vunpack.c.h.b16 %v523
        %v541 = vunpack.c.l.b16 %v524
        %v542 = vunpack.c.h.b16 %v524
        %v543 = vunpack.c.l.b16 %v525
        %v544 = vunpack.c.h.b16 %v525
        %v545 = vunpack.c.l.b16 %v526
        %v546 = vunpack.c.h.b16 %v526
        %v547 = vunpack.c.l.b16 %v527
        %v548 = vunpack.c.h.b16 %v527
        %v549 = vunpack.c.l.b16 %v528
        %v550 = vunpack.c.h.b16 %v528
        %v551 = vunpack.c.l.b16 %v529
        %v552 = vunpack.c.h.b16 %v529
        %v553 = vunpack.c.l.b16 %v530
        %v554 = vunpack.c.h.b16 %v530
        %v555 = vpack.c.b16 %v539, %v539
        %v556 = vpack.c.b16 %v540, %v540
        %v557 = vpack.c.b16 %v541, %v541
        %v558 = vpack.c.b16 %v542, %v542
        %v559 = vpack.c.b16 %v543, %v543
        %v560 = vpack.c.b16 %v544, %v544
        %v561 = vpack.c.b16 %v545, %v545
        %v562 = vpack.c.b16 %v546, %v546
        %v563 = vpack.c.b16 %v547, %v547
        %v564 = vpack.c.b16 %v548, %v548
        %v565 = vpack.c.b16 %v549, %v549
        %v566 = vpack.c.b16 %v550, %v550
        %v567 = vpack.c.b16 %v551, %v551
        %v568 = vpack.c.b16 %v552, %v552
        %v569 = vpack.c.b16 %v553, %v553
        %v570 = vpack.c.b16 %v554, %v554
        %587 = vst [vmem:[%s233] sm:$0xf] %v555
        %588 = vst [vmem:[%s233 + $0x4] sm:$0xf] %v556
        %589 = vst [vmem:[%s233 + $0x8] sm:$0xf] %v557
        %590 = vst [vmem:[%s233 + $0xc] sm:$0xf] %v558
        %591 = vst [vmem:[%s233 + $0x10] sm:$0xf] %v559
        %592 = vst [vmem:[%s233 + $0x14] sm:$0xf] %v560
        %593 = vst [vmem:[%s233 + $0x18] sm:$0xf] %v561
        %594 = vst [vmem:[%s233 + $0x1c] sm:$0xf] %v562
        %595 = vst [vmem:[%s233 + $0x20] sm:$0xf] %v563
        %596 = vst [vmem:[%s233 + $0x24] sm:$0xf] %v564
        %597 = vst [vmem:[%s233 + $0x28] sm:$0xf] %v565
        %598 = vst [vmem:[%s233 + $0x2c] sm:$0xf] %v566
        %599 = vst [vmem:[%s233 + $0x30] sm:$0xf] %v567
        %600 = vst [vmem:[%s233 + $0x34] sm:$0xf] %v568
        %601 = vst [vmem:[%s233 + $0x38] sm:$0xf] %v569
        %602 = vst [vmem:[%s233 + $0x3c] sm:$0xf] %v570
        %s603 = smul.u32 16, %s19
        %p604 = scmp.lt.s32.totalorder %s603, 31
        %s605 = scalar_select %p604, %s603, 31
        %s606 = smul.addr %s605, 4
        %s607 = scalar_lea.vmem %s4, %s606
        // Predicated region
        $region45: #{appnp_forward.3} parent=35 // pred_check
          %p608 = pneg %p126
        $region46: #{appnp_forward.3} parent=35 // pred_check_branch
          %610 = sbr.rel (%p608) target = $region48
        $region47: #{appnp_forward.3} parent=35 // pred_region
          %s611 = smul.u32 16, %s19
        $region48: #{appnp_forward.3} parent=35 // pred_fallthru
          _
      $region36: #{appnp_forward.3} parent=5 // pred_fallthru
        _
      %p612 = scmp.le.s32.totalorder 2, %s14
      // Predicated region
      $region49: #{appnp_forward.3} parent=5 // pred_check
        %p613 = pneg %p612
      $region50: #{appnp_forward.3} parent=5 // pred_check_branch
        %615 = sbr.rel (%p613) target = $region52
      $region51: #{appnp_forward.3} parent=5 // pred_region
        %s616 = ssub.s32 %s14, 2
        // Predicated region
        $region53: #{appnp_forward.3} parent=51 // pred_check
          %p617 = pneg %p132
        $region54: #{appnp_forward.3} parent=51 // pred_check_branch
          %619 = sbr.rel (%p617) target = $region56
        $region55: #{appnp_forward.3} parent=51 // pred_region
          %s620 = smul.u32 16, %s20
          %p621 = scmp.lt.s32.totalorder %s620, 31
          %s622 = scalar_select %p621, %s620, 31
          %s623 = smul.addr %s622, 4
          %s624 = scalar_lea.vmem %s4, %s623
        $region56: #{appnp_forward.3} parent=51 // pred_fallthru
          _
      $region52: #{appnp_forward.3} parent=5 // pred_fallthru
        _
    $region6: #{appnp_forward.3} parent=1 // loop_footer
      %s18 = sadd.s32 1, %s14
    $region7: #{appnp_forward.3} parent=1 // loop_footer_branch
      %13 = sbr.rel target = $region3
    $region8: #{appnp_forward.3} parent=1 // loop_exit
      _
    %625 = vsyncpa [#allocation3], 1
    %s626 = scalar_lea.sflag [#allocation3], 1
    %627 = vsyncpa %s626, 1
    %628 = vsyncpa [#allocation5], 1

// kernel: appnp_forward.4
$region0: #{appnp_forward.4}
  #allocation0 [shape = 'u32[]', space=smem, size = 0x4, offset = 0x4, fixed_abs, tag = 'smem constant byte address 0x4 - core index']
  #allocation1 [shape = 'u32[144,128]{1,0:T(1,128)}', space=vmem, size = 0x12000, scoped, tag = 'internal scratch']
  %s0 = inlined_call_operand.vmem [shape: bf16[256,128], index: 0, kind: input, shape index: {}]
  %s1 = inlined_call_operand.vmem [shape: bf16[128,128], index: 1, kind: input, shape index: {}]
  %s2 = inlined_call_operand.vmem [shape: f32[1,128], index: 2, kind: input, shape index: {}]
  %s3 = inlined_call_operand.vmem [shape: f32[1,128], index: 3, kind: input, shape index: {}]
  %s4 = inlined_call_operand.vmem [shape: bf16[256,128], index: 4, kind: output, shape index: {}]
  %s5 = sld [smem:[#allocation0]]
  $region49: #{appnp_forward.4} parent=0
    _
  %s7 = ssub.s32 1, %s5
  %s8 = scalar_select 0, %s7, %s5
  loop: start=0, step=1, limit=4
  $region2: #{appnp_forward.4} parent=0 // loop_pre_header
    _
  $region3: #{appnp_forward.4} parent=0 // loop_header
    %s10 = sphi 0, %s14
    %p11 = scmp.ge.s32.totalorder %s10, 4
    %s20 = sphi 0, %s22
    %s23 = sphi 0, %s20
    %s24 = sphi 0, %s23
    %s40 = sphi 0, %s24
    %s44 = sphi 0, %s44
    %s46 = sphi 0, %s44
    %s47 = sphi 0, %s46
    %s61 = sphi 0, %s47
    %s65 = sphi 0, %s65
    %s67 = sphi 0, %s65
    %s68 = sphi 0, %s67
    %s82 = sphi 0, %s68
    %s86 = sphi 0, %s86
    %s88 = sphi 0, %s86
    %s89 = sphi 0, %s88
    %s103 = sphi 0, %s89
    %s109 = sphi 0, %s111
    %s112 = sphi 0, %s109
    %s113 = sphi 0, %s112
    %s129 = sphi 0, %s113
  $region4: #{appnp_forward.4} parent=0 // loop_header_branch
    %13 = sbr.rel (%p11) target = $region8
  $region5: #{appnp_forward.4} parent=0 // loop_body
    %s15 = ssub.s32 %s10, 1
    %s16 = ssub.s32 %s10, 2
    %s17 = sadd.s32 %s10, 1
    %s18 = ssub.s32 %s10, %s17
    %p19 = scmp.eq.s32.totalorder %s18, 0
    %s21 = sadd.s32 %s20, 1
    %s22 = scalar_select %p19, %s20, %s21
    %p25 = pneg %p19
    %p26 = scmp.eq.s32.totalorder %s10, 1
    %p27 = por %p25, %p26
    %p28 = scmp.ne.s32.totalorder %s20, %s23
    %p29 = scmp.eq.s32.totalorder %s10, 0
    %p30 = por %p28, %p29
    %p31 = scmp.ne.s32.totalorder %s20, %s23
    %p32 = scmp.eq.s32.totalorder %s15, 1
    %p33 = por %p31, %p32
    %p34 = scmp.ne.s32.totalorder %s23, %s24
    %p35 = scmp.eq.s32.totalorder %s15, 0
    %p36 = por %p34, %p35
    %p37 = scmp.ne.s32.totalorder %s23, %s24
    %p38 = scmp.eq.s32.totalorder %s16, 1
    %p39 = por %p37, %p38
    %p41 = scmp.ne.s32.totalorder %s24, %s40
    %p42 = scmp.eq.s32.totalorder %s16, 0
    %p43 = por %p41, %p42
    %s45 = sadd.s32 %s44, 1
    %p48 = scmp.eq.s32.totalorder %s10, 1
    %p49 = scmp.ne.s32.totalorder %s44, %s46
    %p50 = scmp.eq.s32.totalorder %s10, 0
    %p51 = por %p49, %p50
    %p52 = scmp.ne.s32.totalorder %s44, %s46
    %p53 = scmp.eq.s32.totalorder %s15, 1
    %p54 = por %p52, %p53
    %p55 = scmp.ne.s32.totalorder %s46, %s47
    %p56 = scmp.eq.s32.totalorder %s15, 0
    %p57 = por %p55, %p56
    %p58 = scmp.ne.s32.totalorder %s46, %s47
    %p59 = scmp.eq.s32.totalorder %s16, 1
    %p60 = por %p58, %p59
    %p62 = scmp.ne.s32.totalorder %s47, %s61
    %p63 = scmp.eq.s32.totalorder %s16, 0
    %p64 = por %p62, %p63
    %s66 = sadd.s32 %s65, 1
    %p69 = scmp.eq.s32.totalorder %s10, 1
    %p70 = scmp.ne.s32.totalorder %s65, %s67
    %p71 = scmp.eq.s32.totalorder %s10, 0
    %p72 = por %p70, %p71
    %p73 = scmp.ne.s32.totalorder %s65, %s67
    %p74 = scmp.eq.s32.totalorder %s15, 1
    %p75 = por %p73, %p74
    %p76 = scmp.ne.s32.totalorder %s67, %s68
    %p77 = scmp.eq.s32.totalorder %s15, 0
    %p78 = por %p76, %p77
    %p79 = scmp.ne.s32.totalorder %s67, %s68
    %p80 = scmp.eq.s32.totalorder %s16, 1
    %p81 = por %p79, %p80
    %p83 = scmp.ne.s32.totalorder %s68, %s82
    %p84 = scmp.eq.s32.totalorder %s16, 0
    %p85 = por %p83, %p84
    %s87 = sadd.s32 %s86, 1
    %p90 = scmp.eq.s32.totalorder %s10, 1
    %p91 = scmp.ne.s32.totalorder %s86, %s88
    %p92 = scmp.eq.s32.totalorder %s10, 0
    %p93 = por %p91, %p92
    %p94 = scmp.ne.s32.totalorder %s86, %s88
    %p95 = scmp.eq.s32.totalorder %s15, 1
    %p96 = por %p94, %p95
    %p97 = scmp.ne.s32.totalorder %s88, %s89
    %p98 = scmp.eq.s32.totalorder %s15, 0
    %p99 = por %p97, %p98
    %p100 = scmp.ne.s32.totalorder %s88, %s89
    %p101 = scmp.eq.s32.totalorder %s16, 1
    %p102 = por %p100, %p101
    %p104 = scmp.ne.s32.totalorder %s89, %s103
    %p105 = scmp.eq.s32.totalorder %s16, 0
    %p106 = por %p104, %p105
    %s107 = ssub.s32 %s10, %s17
    %p108 = scmp.eq.s32.totalorder %s107, 0
    %s110 = sadd.s32 %s109, 1
    %s111 = scalar_select %p108, %s109, %s110
    %p114 = pneg %p108
    %p115 = scmp.eq.s32.totalorder %s10, 1
    %p116 = por %p114, %p115
    %p117 = scmp.ne.s32.totalorder %s109, %s112
    %p118 = scmp.eq.s32.totalorder %s10, 0
    %p119 = por %p117, %p118
    %p120 = scmp.ne.s32.totalorder %s109, %s112
    %p121 = scmp.eq.s32.totalorder %s15, 1
    %p122 = por %p120, %p121
    %p123 = scmp.ne.s32.totalorder %s112, %s113
    %p124 = scmp.eq.s32.totalorder %s15, 0
    %p125 = por %p123, %p124
    %p126 = scmp.ne.s32.totalorder %s112, %s113
    %p127 = scmp.eq.s32.totalorder %s16, 1
    %p128 = por %p126, %p127
    %p130 = scmp.ne.s32.totalorder %s113, %s129
    %p131 = scmp.eq.s32.totalorder %s16, 0
    %p132 = por %p130, %p131
    %p133 = scmp.le.s32.totalorder 1, %s10
    %p134 = scmp.lt.s32.totalorder %s10, 3
    %p135 = pnand %p133, %p134
    %p136 = pneg %p135
    // Predicated region
    $region9: #{appnp_forward.4} parent=5 // pred_check
      _
    $region10: #{appnp_forward.4} parent=5 // pred_check_branch
      %138 = sbr.rel (%p135) target = $region12
    $region11: #{appnp_forward.4} parent=5 // pred_region
      %s139 = ssub.s32 %s10, 1
      // Predicated region
      $region13: #{appnp_forward.4} parent=11 // pred_check
        %p140 = pneg %p57
      $region14: #{appnp_forward.4} parent=11 // pred_check_branch
        %142 = sbr.rel (%p140) target = $region16
      $region15: #{appnp_forward.4} parent=11 // pred_region
        _
      $region16: #{appnp_forward.4} parent=11 // pred_fallthru
        _
      // Predicated region
      $region17: #{appnp_forward.4} parent=11 // pred_check
        %p143 = pneg %p78
      $region18: #{appnp_forward.4} parent=11 // pred_check_branch
        %145 = sbr.rel (%p143) target = $region20
      $region19: #{appnp_forward.4} parent=11 // pred_region
        _
      $region20: #{appnp_forward.4} parent=11 // pred_fallthru
        _
      // Predicated region
      $region21: #{appnp_forward.4} parent=11 // pred_check
        %p146 = pneg %p99
      $region22: #{appnp_forward.4} parent=11 // pred_check_branch
        %148 = sbr.rel (%p146) target = $region24
      $region23: #{appnp_forward.4} parent=11 // pred_region
        _
      $region24: #{appnp_forward.4} parent=11 // pred_fallthru
        _
    $region12: #{appnp_forward.4} parent=5 // pred_fallthru
      _
    %p149 = scmp.lt.s32.totalorder %s10, 2
    // Predicated region
    $region25: #{appnp_forward.4} parent=5 // pred_check
      %p150 = pneg %p149
    $region26: #{appnp_forward.4} parent=5 // pred_check_branch
      %152 = sbr.rel (%p150) target = $region28
    $region27: #{appnp_forward.4} parent=5 // pred_region
      // Predicated region
      $region29: #{appnp_forward.4} parent=27 // pred_check
        %p153 = pneg %p30
      $region30: #{appnp_forward.4} parent=27 // pred_check_branch
        %155 = sbr.rel (%p153) target = $region32
      $region31: #{appnp_forward.4} parent=27 // pred_region
        %s156 = smul.u32 16, %s10
        %p157 = scmp.lt.s32.totalorder %s156, 31
        %s158 = scalar_select %p157, %s156, 31
        %s159 = smul.addr %s158, 4
        %s160 = scalar_lea.vmem %s0, %s159
        %s161 = smul.u32 16, %s10
      $region32: #{appnp_forward.4} parent=27 // pred_fallthru
        _
    $region28: #{appnp_forward.4} parent=5 // pred_fallthru
      _
    %p162 = scmp.le.s32.totalorder 1, %s10
    %p163 = scmp.lt.s32.totalorder %s10, 3
    %p164 = pnand %p162, %p163
    %p165 = pneg %p164
    // Predicated region
    $region33: #{appnp_forward.4} parent=5 // pred_check
      _
    $region34: #{appnp_forward.4} parent=5 // pred_check_branch
      %167 = sbr.rel (%p164) target = $region36
    $region35: #{appnp_forward.4} parent=5 // pred_region
      %s168 = ssub.s32 %s10, 1
      %s169 = smul.u32 16, %s15
      %p170 = scmp.lt.s32.totalorder %s169, 31
      %s171 = scalar_select %p170, %s169, 31
      %s172 = smul.addr %s171, 4
      %s173 = scalar_lea.vmem %s0, %s172
      %p174 = pneg %p36
      %p175 = pneg %p33
      %p176 = pneg %p57
      %p177 = pneg %p54
      %p178 = pneg %p78
      %p179 = pneg %p75
      %p180 = pneg %p99
      %p181 = pneg %p96
      %p182 = pneg %p125
      %p183 = pneg %p122
      %s184 = smul.u32 16, %s15
      %p185 = scmp.lt.s32.totalorder %s184, 31
      %s186 = scalar_select %p185, %s184, 31
      %s187 = smul.addr %s186, 4
      %s188 = scalar_lea.vmem %s4, %s187
      %s189 = smul.u32 16, %s15
      %p190 = scmp.lt.s32.totalorder %s189, 31
      %s191 = scalar_select %p190, %s189, 31
      %s192 = smul.addr %s191, 4
      %s193 = scalar_lea.vmem %s0, %s192
      %s194 = smul.u32 16, %s15
      %s195 = smul.u32 16, %s15
      %p196 = scmp.lt.s32.totalorder %s195, 31
      %s197 = scalar_select %p196, %s195, 31
      %s198 = smul.addr %s197, 4
      %s199 = scalar_lea.vmem %s4, %s198
      %s200 = smul.u32 16, %s15
      %v202 = vld [vmem:[%s193] sm:$0xf]
      %v203 = vld [vmem:[%s193 + $0x4] sm:$0xf]
      %v204 = vld [vmem:[%s193 + $0x8] sm:$0xf]
      %v205 = vld [vmem:[%s193 + $0xc] sm:$0xf]
      %v206 = vld [vmem:[%s193 + $0x10] sm:$0xf]
      %v207 = vld [vmem:[%s193 + $0x14] sm:$0xf]
      %v208 = vld [vmem:[%s193 + $0x18] sm:$0xf]
      %v209 = vld [vmem:[%s193 + $0x1c] sm:$0xf]
      %v210 = vld [vmem:[%s193 + $0x20] sm:$0xf]
      %v211 = vld [vmem:[%s193 + $0x24] sm:$0xf]
      %v212 = vld [vmem:[%s193 + $0x28] sm:$0xf]
      %v213 = vld [vmem:[%s193 + $0x2c] sm:$0xf]
      %v214 = vld [vmem:[%s193 + $0x30] sm:$0xf]
      %v215 = vld [vmem:[%s193 + $0x34] sm:$0xf]
      %v216 = vld [vmem:[%s193 + $0x38] sm:$0xf]
      %v217 = vld [vmem:[%s193 + $0x3c] sm:$0xf]
      %v218 = vld [vmem:[%s1] sm:$0xf]
      %v219 = vld [vmem:[%s1 + $0x4] sm:$0xf]
      %v220 = vld [vmem:[%s1 + $0x8] sm:$0xf]
      %v221 = vld [vmem:[%s1 + $0xc] sm:$0xf]
      %v222 = vld [vmem:[%s1 + $0x10] sm:$0xf]
      %v223 = vld [vmem:[%s1 + $0x14] sm:$0xf]
      %v224 = vld [vmem:[%s1 + $0x18] sm:$0xf]
      %v225 = vld [vmem:[%s1 + $0x1c] sm:$0xf]
      %v226 = vld [vmem:[%s1 + $0x20] sm:$0xf]
      %v227 = vld [vmem:[%s1 + $0x24] sm:$0xf]
      %v228 = vld [vmem:[%s1 + $0x28] sm:$0xf]
      %v229 = vld [vmem:[%s1 + $0x2c] sm:$0xf]
      %v230 = vld [vmem:[%s1 + $0x30] sm:$0xf]
      %v231 = vld [vmem:[%s1 + $0x34] sm:$0xf]
      %v232 = vld [vmem:[%s1 + $0x38] sm:$0xf]
      %v233 = vld [vmem:[%s1 + $0x3c] sm:$0xf]
      %v250 = vunpack.c.l.b16 %v202
      %v251 = vunpack.c.l.b16 %v203
      %v252 = vunpack.c.l.b16 %v204
      %v253 = vunpack.c.l.b16 %v205
      %v254 = vunpack.c.l.b16 %v206
      %v255 = vunpack.c.l.b16 %v207
      %v256 = vunpack.c.l.b16 %v208
      %v257 = vunpack.c.l.b16 %v209
      %v258 = vunpack.c.l.b16 %v210
      %v259 = vunpack.c.l.b16 %v211
      %v260 = vunpack.c.l.b16 %v212
      %v261 = vunpack.c.l.b16 %v213
      %v262 = vunpack.c.l.b16 %v214
      %v263 = vunpack.c.l.b16 %v215
      %v264 = vunpack.c.l.b16 %v216
      %v265 = vunpack.c.l.b16 %v217
      %v266 = vpack.c.b16 %v251, %v250
      %v267 = vpack.c.b16 %v253, %v252
      %v268 = vpack.c.b16 %v255, %v254
      %v269 = vpack.c.b16 %v257, %v256
      %v270 = vpack.c.b16 %v259, %v258
      %v271 = vpack.c.b16 %v261, %v260
      %v272 = vpack.c.b16 %v263, %v262
      %v273 = vpack.c.b16 %v265, %v264
      %v298 = vunpack.c.l.b16 %v218
      %v299 = vunpack.c.l.b16 %v219
      %v300 = vunpack.c.l.b16 %v220
      %v301 = vunpack.c.l.b16 %v221
      %v302 = vunpack.c.l.b16 %v222
      %v303 = vunpack.c.l.b16 %v223
      %v304 = vunpack.c.l.b16 %v224
      %v305 = vunpack.c.l.b16 %v225
      %v306 = vunpack.c.l.b16 %v226
      %v307 = vunpack.c.l.b16 %v227
      %v308 = vunpack.c.l.b16 %v228
      %v309 = vunpack.c.l.b16 %v229
      %v310 = vunpack.c.l.b16 %v230
      %v311 = vunpack.c.l.b16 %v231
      %v312 = vunpack.c.l.b16 %v232
      %v313 = vunpack.c.l.b16 %v233
      %v314 = vpack.c.b16 %v299, %v298
      %v315 = vpack.c.b16 %v301, %v300
      %v316 = vpack.c.b16 %v303, %v302
      %v317 = vpack.c.b16 %v305, %v304
      %v318 = vpack.c.b16 %v307, %v306
      %v319 = vpack.c.b16 %v309, %v308
      %v320 = vpack.c.b16 %v311, %v310
      %v321 = vpack.c.b16 %v313, %v312
      %330 = vmatprep.subr.bf16.mxu0 0
      %331 = vmatpush1.bf16.msra.mxu0 %v314
      %332 = vmatprep.subr.bf16.mxu0 0
      %333 = vmatpush1.bf16.msra.mxu0 %v315
      %334 = vmatprep.subr.bf16.mxu0 0
      %335 = vmatpush1.bf16.msra.mxu0 %v316
      %336 = vmatprep.subr.bf16.mxu0 0
      %337 = vmatpush1.bf16.msra.mxu0 %v317
      %338 = vmatprep.subr.bf16.mxu0 0
      %339 = vmatpush1.bf16.msra.mxu0 %v318
      %340 = vmatprep.subr.bf16.mxu0 0
      %341 = vmatpush1.bf16.msra.mxu0 %v319
      %342 = vmatprep.subr.bf16.mxu0 0
      %343 = vmatpush1.bf16.msra.mxu0 %v320
      %344 = vmatprep.subr.bf16.mxu0 0
      %345 = vmatpush1.bf16.msra.mxu0 %v321
      %346 = vmatprep.subr.bf16.mxu0 0
      %347 = vmatpush1.bf16.msra.mxu0 0
      %348 = vmatprep.subr.bf16.mxu0 0
      %349 = vmatpush1.bf16.msra.mxu0 0
      %350 = vmatprep.subr.bf16.mxu0 0
      %351 = vmatpush1.bf16.msra.mxu0 0
      %352 = vmatprep.subr.bf16.mxu0 0
      %353 = vmatpush1.bf16.msra.mxu0 0
      %354 = vmatprep.subr.bf16.mxu0 0
      %355 = vmatpush1.bf16.msra.mxu0 0
      %356 = vmatprep.subr.bf16.mxu0 0
      %357 = vmatpush1.bf16.msra.mxu0 0
      %358 = vmatprep.subr.bf16.mxu0 0
      %359 = vmatpush1.bf16.msra.mxu0 0
      %360 = vmatprep.subr.bf16.mxu0 0
      %361 = vmatpush1.bf16.msra.mxu0 0
      %362 = vmatprep.mubr.bf16.mxu0 0
      %363 = vmatmul.mubr.bf16.gmra.mrb[0].mxu0 %v266
      %v364 = vpop.f32.mrb[0].mxu0
      %v365 = vadd.f32 0.0, %v364
      %v366 = vpop.f32.mrb[0].mxu0
      %v367 = vpop.f32.mrb[0].mxu0
      %v368 = vadd.f32 0.0, %v367
      %v369 = vpop.f32.mrb[0].mxu0
      %370 = vmatprep.mubr.bf16.mxu0 0
      %371 = vmatmul.mubr.bf16.gmra.mrb[0].mxu0 %v267
      %v372 = vpop.f32.mrb[0].mxu0
      %v373 = vadd.f32 0.0, %v372
      %v374 = vpop.f32.mrb[0].mxu0
      %v375 = vpop.f32.mrb[0].mxu0
      %v376 = vadd.f32 0.0, %v375
      %v377 = vpop.f32.mrb[0].mxu0
      %378 = vmatprep.mubr.bf16.mxu0 0
      %379 = vmatmul.mubr.bf16.gmra.mrb[0].mxu0 %v268
      %v380 = vpop.f32.mrb[0].mxu0
      %v381 = vadd.f32 0.0, %v380
      %v382 = vpop.f32.mrb[0].mxu0
      %v383 = vpop.f32.mrb[0].mxu0
      %v384 = vadd.f32 0.0, %v383
      %v385 = vpop.f32.mrb[0].mxu0
      %386 = vmatprep.mubr.bf16.mxu0 0
      %387 = vmatmul.mubr.bf16.gmra.mrb[0].mxu0 %v269
      %v388 = vpop.f32.mrb[0].mxu0
      %v389 = vadd.f32 0.0, %v388
      %v390 = vpop.f32.mrb[0].mxu0
      %v391 = vpop.f32.mrb[0].mxu0
      %v392 = vadd.f32 0.0, %v391
      %v393 = vpop.f32.mrb[0].mxu0
      %394 = vmatprep.mubr.bf16.mxu0 0
      %395 = vmatmul.mubr.bf16.gmra.mrb[0].mxu0 %v270
      %v396 = vpop.f32.mrb[0].mxu0
      %v397 = vadd.f32 0.0, %v396
      %v398 = vpop.f32.mrb[0].mxu0
      %v399 = vpop.f32.mrb[0].mxu0
      %v400 = vadd.f32 0.0, %v399
      %v401 = vpop.f32.mrb[0].mxu0
      %402 = vmatprep.mubr.bf16.mxu0 0
      %403 = vmatmul.mubr.bf16.gmra.mrb[0].mxu0 %v271
      %v404 = vpop.f32.mrb[0].mxu0
      %v405 = vadd.f32 0.0, %v404
      %v406 = vpop.f32.mrb[0].mxu0
      %v407 = vpop.f32.mrb[0].mxu0
      %v408 = vadd.f32 0.0, %v407
      %v409 = vpop.f32.mrb[0].mxu0
      %410 = vmatprep.mubr.bf16.mxu0 0
      %411 = vmatmul.mubr.bf16.gmra.mrb[0].mxu0 %v272
      %v412 = vpop.f32.mrb[0].mxu0
      %v413 = vadd.f32 0.0, %v412
      %v414 = vpop.f32.mrb[0].mxu0
      %v415 = vpop.f32.mrb[0].mxu0
      %v416 = vadd.f32 0.0, %v415
      %v417 = vpop.f32.mrb[0].mxu0
      %418 = vmatprep.mubr.bf16.mxu0 0
      %419 = vmatmul.mubr.bf16.gmra.mrb[0].mxu0 %v273
      %v420 = vpop.f32.mrb[0].mxu0
      %v421 = vadd.f32 0.0, %v420
      %v422 = vpop.f32.mrb[0].mxu0
      %v423 = vpop.f32.mrb[0].mxu0
      %v424 = vadd.f32 0.0, %v423
      %v425 = vpop.f32.mrb[0].mxu0
      %426 = vdwg.mxu0
      %v427 = vld [vmem:[%s2] sm:$0x1]
      %v429 = vlaneseq
      %v430 = vshrl.u32 %v429, 7
      %v431 = vsub.s32 0, %v430
      %v432 = vrot.slane %v427, %v431
      %v434 = vmul.f32 %v365, %v432
      %v435 = vmul.f32 %v368, %v432
      %v436 = vmul.f32 %v373, %v432
      %v437 = vmul.f32 %v376, %v432
      %v438 = vmul.f32 %v381, %v432
      %v439 = vmul.f32 %v384, %v432
      %v440 = vmul.f32 %v389, %v432
      %v441 = vmul.f32 %v392, %v432
      %v442 = vmul.f32 %v397, %v432
      %v443 = vmul.f32 %v400, %v432
      %v444 = vmul.f32 %v405, %v432
      %v445 = vmul.f32 %v408, %v432
      %v446 = vmul.f32 %v413, %v432
      %v447 = vmul.f32 %v416, %v432
      %v448 = vmul.f32 %v421, %v432
      %v449 = vmul.f32 %v424, %v432
      %v450 = vld [vmem:[%s3] sm:$0x1]
      %v452 = vlaneseq
      %v453 = vshrl.u32 %v452, 7
      %v454 = vsub.s32 0, %v453
      %v455 = vrot.slane %v450, %v454
      %v457 = vadd.f32 %v434, %v455
      %v458 = vadd.f32 %v435, %v455
      %v459 = vadd.f32 %v436, %v455
      %v460 = vadd.f32 %v437, %v455
      %v461 = vadd.f32 %v438, %v455
      %v462 = vadd.f32 %v439, %v455
      %v463 = vadd.f32 %v440, %v455
      %v464 = vadd.f32 %v441, %v455
      %v465 = vadd.f32 %v442, %v455
      %v466 = vadd.f32 %v443, %v455
      %v467 = vadd.f32 %v444, %v455
      %v468 = vadd.f32 %v445, %v455
      %v469 = vadd.f32 %v446, %v455
      %v470 = vadd.f32 %v447, %v455
      %v471 = vadd.f32 %v448, %v455
      %v472 = vadd.f32 %v449, %v455
      %v473 = vmax.f32 %v457, 0.0
      %v474 = vmax.f32 %v458, 0.0
      %v475 = vmax.f32 %v459, 0.0
      %v476 = vmax.f32 %v460, 0.0
      %v477 = vmax.f32 %v461, 0.0
      %v478 = vmax.f32 %v462, 0.0
      %v479 = vmax.f32 %v463, 0.0
      %v480 = vmax.f32 %v464, 0.0
      %v481 = vmax.f32 %v465, 0.0
      %v482 = vmax.f32 %v466, 0.0
      %v483 = vmax.f32 %v467, 0.0
      %v484 = vmax.f32 %v468, 0.0
      %v485 = vmax.f32 %v469, 0.0
      %v486 = vmax.f32 %v470, 0.0
      %v487 = vmax.f32 %v471, 0.0
      %v488 = vmax.f32 %v472, 0.0
      %v489 = vpack.c.bf16 %v474, %v473
      %v490 = vpack.c.bf16 %v476, %v475
      %v491 = vpack.c.bf16 %v478, %v477
      %v492 = vpack.c.bf16 %v480, %v479
      %v493 = vpack.c.bf16 %v482, %v481
      %v494 = vpack.c.bf16 %v484, %v483
      %v495 = vpack.c.bf16 %v486, %v485
      %v496 = vpack.c.bf16 %v488, %v487
      %v505 = vunpack.c.l.b16 %v489
      %v506 = vunpack.c.h.b16 %v489
      %v507 = vunpack.c.l.b16 %v490
      %v508 = vunpack.c.h.b16 %v490
      %v509 = vunpack.c.l.b16 %v491
      %v510 = vunpack.c.h.b16 %v491
      %v511 = vunpack.c.l.b16 %v492
      %v512 = vunpack.c.h.b16 %v492
      %v513 = vunpack.c.l.b16 %v493
      %v514 = vunpack.c.h.b16 %v493
      %v515 = vunpack.c.l.b16 %v494
      %v516 = vunpack.c.h.b16 %v494
      %v517 = vunpack.c.l.b16 %v495
      %v518 = vunpack.c.h.b16 %v495
      %v519 = vunpack.c.l.b16 %v496
      %v520 = vunpack.c.h.b16 %v496
      %v521 = vpack.c.b16 %v505, %v505
      %v522 = vpack.c.b16 %v506, %v506
      %v523 = vpack.c.b16 %v507, %v507
      %v524 = vpack.c.b16 %v508, %v508
      %v525 = vpack.c.b16 %v509, %v509
      %v526 = vpack.c.b16 %v510, %v510
      %v527 = vpack.c.b16 %v511, %v511
      %v528 = vpack.c.b16 %v512, %v512
      %v529 = vpack.c.b16 %v513, %v513
      %v530 = vpack.c.b16 %v514, %v514
      %v531 = vpack.c.b16 %v515, %v515
      %v532 = vpack.c.b16 %v516, %v516
      %v533 = vpack.c.b16 %v517, %v517
      %v534 = vpack.c.b16 %v518, %v518
      %v535 = vpack.c.b16 %v519, %v519
      %v536 = vpack.c.b16 %v520, %v520
      %553 = vst [vmem:[%s199] sm:$0xf] %v521
      %554 = vst [vmem:[%s199 + $0x4] sm:$0xf] %v522
      %555 = vst [vmem:[%s199 + $0x8] sm:$0xf] %v523
      %556 = vst [vmem:[%s199 + $0xc] sm:$0xf] %v524
      %557 = vst [vmem:[%s199 + $0x10] sm:$0xf] %v525
      %558 = vst [vmem:[%s199 + $0x14] sm:$0xf] %v526
      %559 = vst [vmem:[%s199 + $0x18] sm:$0xf] %v527
      %560 = vst [vmem:[%s199 + $0x1c] sm:$0xf] %v528
      %561 = vst [vmem:[%s199 + $0x20] sm:$0xf] %v529
      %562 = vst [vmem:[%s199 + $0x24] sm:$0xf] %v530
      %563 = vst [vmem:[%s199 + $0x28] sm:$0xf] %v531
      %564 = vst [vmem:[%s199 + $0x2c] sm:$0xf] %v532
      %565 = vst [vmem:[%s199 + $0x30] sm:$0xf] %v533
      %566 = vst [vmem:[%s199 + $0x34] sm:$0xf] %v534
      %567 = vst [vmem:[%s199 + $0x38] sm:$0xf] %v535
      %568 = vst [vmem:[%s199 + $0x3c] sm:$0xf] %v536
      %s569 = smul.u32 16, %s15
      %p570 = scmp.lt.s32.totalorder %s569, 31
      %s571 = scalar_select %p570, %s569, 31
      %s572 = smul.addr %s571, 4
      %s573 = scalar_lea.vmem %s4, %s572
      // Predicated region
      $region37: #{appnp_forward.4} parent=35 // pred_check
        %p574 = pneg %p122
      $region38: #{appnp_forward.4} parent=35 // pred_check_branch
        %576 = sbr.rel (%p574) target = $region40
      $region39: #{appnp_forward.4} parent=35 // pred_region
        %s577 = smul.u32 16, %s15
      $region40: #{appnp_forward.4} parent=35 // pred_fallthru
        _
    $region36: #{appnp_forward.4} parent=5 // pred_fallthru
      _
    %p578 = scmp.le.s32.totalorder 2, %s10
    // Predicated region
    $region41: #{appnp_forward.4} parent=5 // pred_check
      %p579 = pneg %p578
    $region42: #{appnp_forward.4} parent=5 // pred_check_branch
      %581 = sbr.rel (%p579) target = $region44
    $region43: #{appnp_forward.4} parent=5 // pred_region
      %s582 = ssub.s32 %s10, 2
      // Predicated region
      $region45: #{appnp_forward.4} parent=43 // pred_check
        %p583 = pneg %p128
      $region46: #{appnp_forward.4} parent=43 // pred_check_branch
        %585 = sbr.rel (%p583) target = $region48
      $region47: #{appnp_forward.4} parent=43 // pred_region
        %s586 = smul.u32 16, %s16
        %p587 = scmp.lt.s32.totalorder %s586, 31
        %s588 = scalar_select %p587, %s586, 31
        %s589 = smul.addr %s588, 4
        %s590 = scalar_lea.vmem %s4, %s589
      $region48: #{appnp_forward.4} parent=43 // pred_fallthru
        _
    $region44: #{appnp_forward.4} parent=5 // pred_fallthru
      _
  $region6: #{appnp_forward.4} parent=0 // loop_footer
    %s14 = sadd.s32 1, %s10
  $region7: #{appnp_forward.4} parent=0 // loop_footer_branch
    %9 = sbr.rel target = $region3
  $region8: #{appnp_forward.4} parent=0 // loop_exit
    _

// kernel: appnp_forward.5
$region0: #{appnp_forward.5}
  #allocation0 [shape = 'u32[]', space=smem, size = 0x4, offset = 0x4, fixed_abs, tag = 'smem constant byte address 0x4 - core index']
  #allocation1 [shape = 'u32[144,128]{1,0:T(1,128)}', space=vmem, size = 0x12000, scoped, tag = 'internal scratch']
  %s0 = inlined_call_operand.vmem [shape: bf16[256,128], index: 0, kind: input, shape index: {}]
  %s1 = inlined_call_operand.vmem [shape: bf16[128,128], index: 1, kind: input, shape index: {}]
  %s2 = inlined_call_operand.vmem [shape: f32[1,128], index: 2, kind: input, shape index: {}]
  %s3 = inlined_call_operand.vmem [shape: bf16[256,256], index: 3, kind: input, shape index: {}]
  %s4 = inlined_call_operand.vmem [shape: f32[256,128], index: 4, kind: output, shape index: {}]
  %s5 = sld [smem:[#allocation0]]
  $region26: #{appnp_forward.5} parent=0
    _
  %s7 = ssub.s32 1, %s5
  %s8 = scalar_select 0, %s7, %s5
  // Predicated region
  $region2: #{appnp_forward.5} parent=0 // pred_check
    _
  $region3: #{appnp_forward.5} parent=0 // pred_check_branch
    %10 = sbr.rel (0) target = $region5
  $region4: #{appnp_forward.5} parent=0 // pred_region
    _
  $region5: #{appnp_forward.5} parent=0 // pred_fallthru
    _
  // Predicated region
  $region6: #{appnp_forward.5} parent=0 // pred_check
    _
  $region7: #{appnp_forward.5} parent=0 // pred_check_branch
    %12 = sbr.rel (0) target = $region9
  $region8: #{appnp_forward.5} parent=0 // pred_region
    _
  $region9: #{appnp_forward.5} parent=0 // pred_fallthru
    _
  // Predicated region
  $region10: #{appnp_forward.5} parent=0 // pred_check
    _
  $region11: #{appnp_forward.5} parent=0 // pred_check_branch
    %14 = sbr.rel (0) target = $region13
  $region12: #{appnp_forward.5} parent=0 // pred_region
    _
  $region13: #{appnp_forward.5} parent=0 // pred_fallthru
    _
  // Predicated region
  $region14: #{appnp_forward.5} parent=0 // pred_check
    _
  $region15: #{appnp_forward.5} parent=0 // pred_check_branch
    %16 = sbr.rel (0) target = $region17
  $region16: #{appnp_forward.5} parent=0 // pred_region
    _
  $region17: #{appnp_forward.5} parent=0 // pred_fallthru
    _
  %v18 = vld [vmem:[%s0] sm:$0xf]
  %v19 = vld [vmem:[%s0 + $0x4] sm:$0xf]
  %v20 = vld [vmem:[%s0 + $0x8] sm:$0xf]
  %v21 = vld [vmem:[%s0 + $0xc] sm:$0xf]
  %v22 = vld [vmem:[%s0 + $0x10] sm:$0xf]
  %v23 = vld [vmem:[%s0 + $0x14] sm:$0xf]
  %v24 = vld [vmem:[%s0 + $0x18] sm:$0xf]
  %v25 = vld [vmem:[%s0 + $0x1c] sm:$0xf]
  %v26 = vld [vmem:[%s0 + $0x20] sm:$0xf]
  %v27 = vld [vmem:[%s0 + $0x24] sm:$0xf]
  %v28 = vld [vmem:[%s0 + $0x28] sm:$0xf]
  %v29 = vld [vmem:[%s0 + $0x2c] sm:$0xf]
  %v30 = vld [vmem:[%s0 + $0x30] sm:$0xf]
  %v31 = vld [vmem:[%s0 + $0x34] sm:$0xf]
  %v32 = vld [vmem:[%s0 + $0x38] sm:$0xf]
  %v33 = vld [vmem:[%s0 + $0x3c] sm:$0xf]
  %v34 = vld [vmem:[%s0 + $0x40] sm:$0xf]
  %v35 = vld [vmem:[%s0 + $0x44] sm:$0xf]
  %v36 = vld [vmem:[%s0 + $0x48] sm:$0xf]
  %v37 = vld [vmem:[%s0 + $0x4c] sm:$0xf]
  %v38 = vld [vmem:[%s0 + $0x50] sm:$0xf]
  %v39 = vld [vmem:[%s0 + $0x54] sm:$0xf]
  %v40 = vld [vmem:[%s0 + $0x58] sm:$0xf]
  %v41 = vld [vmem:[%s0 + $0x5c] sm:$0xf]
  %v42 = vld [vmem:[%s0 + $0x60] sm:$0xf]
  %v43 = vld [vmem:[%s0 + $0x64] sm:$0xf]
  %v44 = vld [vmem:[%s0 + $0x68] sm:$0xf]
  %v45 = vld [vmem:[%s0 + $0x6c] sm:$0xf]
  %v46 = vld [vmem:[%s0 + $0x70] sm:$0xf]
  %v47 = vld [vmem:[%s0 + $0x74] sm:$0xf]
  %v48 = vld [vmem:[%s0 + $0x78] sm:$0xf]
  %v49 = vld [vmem:[%s0 + $0x7c] sm:$0xf]
  %v50 = vld [vmem:[%s1] sm:$0xf]
  %v51 = vld [vmem:[%s1 + $0x4] sm:$0xf]
  %v52 = vld [vmem:[%s1 + $0x8] sm:$0xf]
  %v53 = vld [vmem:[%s1 + $0xc] sm:$0xf]
  %v54 = vld [vmem:[%s1 + $0x10] sm:$0xf]
  %v55 = vld [vmem:[%s1 + $0x14] sm:$0xf]
  %v56 = vld [vmem:[%s1 + $0x18] sm:$0xf]
  %v57 = vld [vmem:[%s1 + $0x1c] sm:$0xf]
  %v58 = vld [vmem:[%s1 + $0x20] sm:$0xf]
  %v59 = vld [vmem:[%s1 + $0x24] sm:$0xf]
  %v60 = vld [vmem:[%s1 + $0x28] sm:$0xf]
  %v61 = vld [vmem:[%s1 + $0x2c] sm:$0xf]
  %v62 = vld [vmem:[%s1 + $0x30] sm:$0xf]
  %v63 = vld [vmem:[%s1 + $0x34] sm:$0xf]
  %v64 = vld [vmem:[%s1 + $0x38] sm:$0xf]
  %v65 = vld [vmem:[%s1 + $0x3c] sm:$0xf]
  %v66 = vld [vmem:[%s2] sm:$0x1]
  %v68 = vlaneseq
  %v69 = vshrl.u32 %v68, 7
  %v70 = vsub.s32 0, %v69
  %v71 = vrot.slane %v66, %v70
  %v105 = vunpack.c.l.b16 %v18
  %v106 = vunpack.c.l.b16 %v19
  %v107 = vunpack.c.l.b16 %v20
  %v108 = vunpack.c.l.b16 %v21
  %v109 = vunpack.c.l.b16 %v22
  %v110 = vunpack.c.l.b16 %v23
  %v111 = vunpack.c.l.b16 %v24
  %v112 = vunpack.c.l.b16 %v25
  %v113 = vunpack.c.l.b16 %v26
  %v114 = vunpack.c.l.b16 %v27
  %v115 = vunpack.c.l.b16 %v28
  %v116 = vunpack.c.l.b16 %v29
  %v117 = vunpack.c.l.b16 %v30
  %v118 = vunpack.c.l.b16 %v31
  %v119 = vunpack.c.l.b16 %v32
  %v120 = vunpack.c.l.b16 %v33
  %v121 = vunpack.c.l.b16 %v34
  %v122 = vunpack.c.l.b16 %v35
  %v123 = vunpack.c.l.b16 %v36
  %v124 = vunpack.c.l.b16 %v37
  %v125 = vunpack.c.l.b16 %v38
  %v126 = vunpack.c.l.b16 %v39
  %v127 = vunpack.c.l.b16 %v40
  %v128 = vunpack.c.l.b16 %v41
  %v129 = vunpack.c.l.b16 %v42
  %v130 = vunpack.c.l.b16 %v43
  %v131 = vunpack.c.l.b16 %v44
  %v132 = vunpack.c.l.b16 %v45
  %v133 = vunpack.c.l.b16 %v46
  %v134 = vunpack.c.l.b16 %v47
  %v135 = vunpack.c.l.b16 %v48
  %v136 = vunpack.c.l.b16 %v49
  %v137 = vpack.c.b16 %v106, %v105
  %v138 = vpack.c.b16 %v108, %v107
  %v139 = vpack.c.b16 %v110, %v109
  %v140 = vpack.c.b16 %v112, %v111
  %v141 = vpack.c.b16 %v114, %v113
  %v142 = vpack.c.b16 %v116, %v115
  %v143 = vpack.c.b16 %v118, %v117
  %v144 = vpack.c.b16 %v120, %v119
  %v145 = vpack.c.b16 %v122, %v121
  %v146 = vpack.c.b16 %v124, %v123
  %v147 = vpack.c.b16 %v126, %v125
  %v148 = vpack.c.b16 %v128, %v127
  %v149 = vpack.c.b16 %v130, %v129
  %v150 = vpack.c.b16 %v132, %v131
  %v151 = vpack.c.b16 %v134, %v133
  %v152 = vpack.c.b16 %v136, %v135
  %v185 = vunpack.c.l.b16 %v50
  %v186 = vunpack.c.l.b16 %v51
  %v187 = vunpack.c.l.b16 %v52
  %v188 = vunpack.c.l.b16 %v53
  %v189 = vunpack.c.l.b16 %v54
  %v190 = vunpack.c.l.b16 %v55
  %v191 = vunpack.c.l.b16 %v56
  %v192 = vunpack.c.l.b16 %v57
  %v193 = vunpack.c.l.b16 %v58
  %v194 = vunpack.c.l.b16 %v59
  %v195 = vunpack.c.l.b16 %v60
  %v196 = vunpack.c.l.b16 %v61
  %v197 = vunpack.c.l.b16 %v62
  %v198 = vunpack.c.l.b16 %v63
  %v199 = vunpack.c.l.b16 %v64
  %v200 = vunpack.c.l.b16 %v65
  %v201 = vpack.c.b16 %v186, %v185
  %v202 = vpack.c.b16 %v188, %v187
  %v203 = vpack.c.b16 %v190, %v189
  %v204 = vpack.c.b16 %v192, %v191
  %v205 = vpack.c.b16 %v194, %v193
  %v206 = vpack.c.b16 %v196, %v195
  %v207 = vpack.c.b16 %v198, %v197
  %v208 = vpack.c.b16 %v200, %v199
  %217 = vmatprep.subr.bf16.mxu0 0
  %218 = vmatpush1.bf16.msra.mxu0 %v201
  %219 = vmatprep.subr.bf16.mxu0 0
  %220 = vmatpush1.bf16.msra.mxu0 %v202
  %221 = vmatprep.subr.bf16.mxu0 0
  %222 = vmatpush1.bf16.msra.mxu0 %v203
  %223 = vmatprep.subr.bf16.mxu0 0
  %224 = vmatpush1.bf16.msra.mxu0 %v204
  %225 = vmatprep.subr.bf16.mxu0 0
  %226 = vmatpush1.bf16.msra.mxu0 %v205
  %227 = vmatprep.subr.bf16.mxu0 0
  %228 = vmatpush1.bf16.msra.mxu0 %v206
  %229 = vmatprep.subr.bf16.mxu0 0
  %230 = vmatpush1.bf16.msra.mxu0 %v207
  %231 = vmatprep.subr.bf16.mxu0 0
  %232 = vmatpush1.bf16.msra.mxu0 %v208
  %233 = vmatprep.subr.bf16.mxu0 0
  %234 = vmatpush1.bf16.msra.mxu0 0
  %235 = vmatprep.subr.bf16.mxu0 0
  %236 = vmatpush1.bf16.msra.mxu0 0
  %237 = vmatprep.subr.bf16.mxu0 0
  %238 = vmatpush1.bf16.msra.mxu0 0
  %239 = vmatprep.subr.bf16.mxu0 0
  %240 = vmatpush1.bf16.msra.mxu0 0
  %241 = vmatprep.subr.bf16.mxu0 0
  %242 = vmatpush1.bf16.msra.mxu0 0
  %243 = vmatprep.subr.bf16.mxu0 0
  %244 = vmatpush1.bf16.msra.mxu0 0
  %245 = vmatprep.subr.bf16.mxu0 0
  %246 = vmatpush1.bf16.msra.mxu0 0
  %247 = vmatprep.subr.bf16.mxu0 0
  %248 = vmatpush1.bf16.msra.mxu0 0
  %249 = vmatprep.mubr.bf16.mxu0 0
  %250 = vmatmul.mubr.bf16.gmra.mrb[0].mxu0 %v137
  %v251 = vpop.f32.mrb[0].mxu0
  %v252 = vadd.f32 %v71, %v251
  %v253 = vpop.f32.mrb[0].mxu0
  %v254 = vpop.f32.mrb[0].mxu0
  %v255 = vadd.f32 %v71, %v254
  %v256 = vpop.f32.mrb[0].mxu0
  %257 = vmatprep.mubr.bf16.mxu0 0
  %258 = vmatmul.mubr.bf16.gmra.mrb[0].mxu0 %v138
  %v259 = vpop.f32.mrb[0].mxu0
  %v260 = vadd.f32 %v71, %v259
  %v261 = vpop.f32.mrb[0].mxu0
  %v262 = vpop.f32.mrb[0].mxu0
  %v263 = vadd.f32 %v71, %v262
  %v264 = vpop.f32.mrb[0].mxu0
  %265 = vmatprep.mubr.bf16.mxu0 0
  %266 = vmatmul.mubr.bf16.gmra.mrb[0].mxu0 %v139
  %v267 = vpop.f32.mrb[0].mxu0
  %v268 = vadd.f32 %v71, %v267
  %v269 = vpop.f32.mrb[0].mxu0
  %v270 = vpop.f32.mrb[0].mxu0
  %v271 = vadd.f32 %v71, %v270
  %v272 = vpop.f32.mrb[0].mxu0
  %273 = vmatprep.mubr.bf16.mxu0 0
  %274 = vmatmul.mubr.bf16.gmra.mrb[0].mxu0 %v140
  %v275 = vpop.f32.mrb[0].mxu0
  %v276 = vadd.f32 %v71, %v275
  %v277 = vpop.f32.mrb[0].mxu0
  %v278 = vpop.f32.mrb[0].mxu0
  %v279 = vadd.f32 %v71, %v278
  %v280 = vpop.f32.mrb[0].mxu0
  %281 = vmatprep.mubr.bf16.mxu0 0
  %282 = vmatmul.mubr.bf16.gmra.mrb[0].mxu0 %v141
  %v283 = vpop.f32.mrb[0].mxu0
  %v284 = vadd.f32 %v71, %v283
  %v285 = vpop.f32.mrb[0].mxu0
  %v286 = vpop.f32.mrb[0].mxu0
  %v287 = vadd.f32 %v71, %v286
  %v288 = vpop.f32.mrb[0].mxu0
  %289 = vmatprep.mubr.bf16.mxu0 0
  %290 = vmatmul.mubr.bf16.gmra.mrb[0].mxu0 %v142
  %v291 = vpop.f32.mrb[0].mxu0
  %v292 = vadd.f32 %v71, %v291
  %v293 = vpop.f32.mrb[0].mxu0
  %v294 = vpop.f32.mrb[0].mxu0
  %v295 = vadd.f32 %v71, %v294
  %v296 = vpop.f32.mrb[0].mxu0
  %297 = vmatprep.mubr.bf16.mxu0 0
  %298 = vmatmul.mubr.bf16.gmra.mrb[0].mxu0 %v143
  %v299 = vpop.f32.mrb[0].mxu0
  %v300 = vadd.f32 %v71, %v299
  %v301 = vpop.f32.mrb[0].mxu0
  %v302 = vpop.f32.mrb[0].mxu0
  %v303 = vadd.f32 %v71, %v302
  %v304 = vpop.f32.mrb[0].mxu0
  %305 = vmatprep.mubr.bf16.mxu0 0
  %306 = vmatmul.mubr.bf16.gmra.mrb[0].mxu0 %v144
  %v307 = vpop.f32.mrb[0].mxu0
  %v308 = vadd.f32 %v71, %v307
  %v309 = vpop.f32.mrb[0].mxu0
  %v310 = vpop.f32.mrb[0].mxu0
  %v311 = vadd.f32 %v71, %v310
  %v312 = vpop.f32.mrb[0].mxu0
  %313 = vmatprep.mubr.bf16.mxu0 0
  %314 = vmatmul.mubr.bf16.gmra.mrb[0].mxu0 %v145
  %v315 = vpop.f32.mrb[0].mxu0
  %v316 = vadd.f32 %v71, %v315
  %v317 = vpop.f32.mrb[0].mxu0
  %v318 = vpop.f32.mrb[0].mxu0
  %v319 = vadd.f32 %v71, %v318
  %v320 = vpop.f32.mrb[0].mxu0
  %321 = vmatprep.mubr.bf16.mxu0 0
  %322 = vmatmul.mubr.bf16.gmra.mrb[0].mxu0 %v146
  %v323 = vpop.f32.mrb[0].mxu0
  %v324 = vadd.f32 %v71, %v323
  %v325 = vpop.f32.mrb[0].mxu0
  %v326 = vpop.f32.mrb[0].mxu0
  %v327 = vadd.f32 %v71, %v326
  %v328 = vpop.f32.mrb[0].mxu0
  %329 = vmatprep.mubr.bf16.mxu0 0
  %330 = vmatmul.mubr.bf16.gmra.mrb[0].mxu0 %v147
  %v331 = vpop.f32.mrb[0].mxu0
  %v332 = vadd.f32 %v71, %v331
  %v333 = vpop.f32.mrb[0].mxu0
  %v334 = vpop.f32.mrb[0].mxu0
  %v335 = vadd.f32 %v71, %v334
  %v336 = vpop.f32.mrb[0].mxu0
  %337 = vmatprep.mubr.bf16.mxu0 0
  %338 = vmatmul.mubr.bf16.gmra.mrb[0].mxu0 %v148
  %v339 = vpop.f32.mrb[0].mxu0
  %v340 = vadd.f32 %v71, %v339
  %v341 = vpop.f32.mrb[0].mxu0
  %v342 = vpop.f32.mrb[0].mxu0
  %v343 = vadd.f32 %v71, %v342
  %v344 = vpop.f32.mrb[0].mxu0
  %345 = vmatprep.mubr.bf16.mxu0 0
  %346 = vmatmul.mubr.bf16.gmra.mrb[0].mxu0 %v149
  %v347 = vpop.f32.mrb[0].mxu0
  %v348 = vadd.f32 %v71, %v347
  %v349 = vpop.f32.mrb[0].mxu0
  %v350 = vpop.f32.mrb[0].mxu0
  %v351 = vadd.f32 %v71, %v350
  %v352 = vpop.f32.mrb[0].mxu0
  %353 = vmatprep.mubr.bf16.mxu0 0
  %354 = vmatmul.mubr.bf16.gmra.mrb[0].mxu0 %v150
  %v355 = vpop.f32.mrb[0].mxu0
  %v356 = vadd.f32 %v71, %v355
  %v357 = vpop.f32.mrb[0].mxu0
  %v358 = vpop.f32.mrb[0].mxu0
  %v359 = vadd.f32 %v71, %v358
  %v360 = vpop.f32.mrb[0].mxu0
  %361 = vmatprep.mubr.bf16.mxu0 0
  %362 = vmatmul.mubr.bf16.gmra.mrb[0].mxu0 %v151
  %v363 = vpop.f32.mrb[0].mxu0
  %v364 = vadd.f32 %v71, %v363
  %v365 = vpop.f32.mrb[0].mxu0
  %v366 = vpop.f32.mrb[0].mxu0
  %v367 = vadd.f32 %v71, %v366
  %v368 = vpop.f32.mrb[0].mxu0
  %369 = vmatprep.mubr.bf16.mxu0 0
  %370 = vmatmul.mubr.bf16.gmra.mrb[0].mxu0 %v152
  %v371 = vpop.f32.mrb[0].mxu0
  %v372 = vadd.f32 %v71, %v371
  %v373 = vpop.f32.mrb[0].mxu0
  %v374 = vpop.f32.mrb[0].mxu0
  %v375 = vadd.f32 %v71, %v374
  %v376 = vpop.f32.mrb[0].mxu0
  %377 = vdwg.mxu0
  %v378 = vld [vmem:[%s3] sm:$0xff]
  %v379 = vld [vmem:[%s3 + $0x8] sm:$0xff]
  %v380 = vld [vmem:[%s3 + $0x10] sm:$0xff]
  %v381 = vld [vmem:[%s3 + $0x18] sm:$0xff]
  %v382 = vld [vmem:[%s3 + $0x20] sm:$0xff]
  %v383 = vld [vmem:[%s3 + $0x28] sm:$0xff]
  %v384 = vld [vmem:[%s3 + $0x30] sm:$0xff]
  %v385 = vld [vmem:[%s3 + $0x38] sm:$0xff]
  %v386 = vld [vmem:[%s3 + $0x40] sm:$0xff]
  %v387 = vld [vmem:[%s3 + $0x48] sm:$0xff]
  %v388 = vld [vmem:[%s3 + $0x50] sm:$0xff]
  %v389 = vld [vmem:[%s3 + $0x58] sm:$0xff]
  %v390 = vld [vmem:[%s3 + $0x60] sm:$0xff]
  %v391 = vld [vmem:[%s3 + $0x68] sm:$0xff]
  %v392 = vld [vmem:[%s3 + $0x70] sm:$0xff]
  %v393 = vld [vmem:[%s3 + $0x78] sm:$0xff]
  %v394 = vld [vmem:[%s3 + $0x80] sm:$0xff]
  %v395 = vld [vmem:[%s3 + $0x88] sm:$0xff]
  %v396 = vld [vmem:[%s3 + $0x90] sm:$0xff]
  %v397 = vld [vmem:[%s3 + $0x98] sm:$0xff]
  %v398 = vld [vmem:[%s3 + $0xa0] sm:$0xff]
  %v399 = vld [vmem:[%s3 + $0xa8] sm:$0xff]
  %v400 = vld [vmem:[%s3 + $0xb0] sm:$0xff]
  %v401 = vld [vmem:[%s3 + $0xb8] sm:$0xff]
  %v402 = vld [vmem:[%s3 + $0xc0] sm:$0xff]
  %v403 = vld [vmem:[%s3 + $0xc8] sm:$0xff]
  %v404 = vld [vmem:[%s3 + $0xd0] sm:$0xff]
  %v405 = vld [vmem:[%s3 + $0xd8] sm:$0xff]
  %v406 = vld [vmem:[%s3 + $0xe0] sm:$0xff]
  %v407 = vld [vmem:[%s3 + $0xe8] sm:$0xff]
  %v408 = vld [vmem:[%s3 + $0xf0] sm:$0xff]
  %v409 = vld [vmem:[%s3 + $0xf8] sm:$0xff]
  %v410 = vmul.f32 %v252, 0.5
  %v411 = vmul.f32 %v255, 0.5
  %v412 = vmul.f32 %v260, 0.5
  %v413 = vmul.f32 %v263, 0.5
  %v414 = vmul.f32 %v268, 0.5
  %v415 = vmul.f32 %v271, 0.5
  %v416 = vmul.f32 %v276, 0.5
  %v417 = vmul.f32 %v279, 0.5
  %v418 = vmul.f32 %v284, 0.5
  %v419 = vmul.f32 %v287, 0.5
  %v420 = vmul.f32 %v292, 0.5
  %v421 = vmul.f32 %v295, 0.5
  %v422 = vmul.f32 %v300, 0.5
  %v423 = vmul.f32 %v303, 0.5
  %v424 = vmul.f32 %v308, 0.5
  %v425 = vmul.f32 %v311, 0.5
  %v426 = vmul.f32 %v316, 0.5
  %v427 = vmul.f32 %v319, 0.5
  %v428 = vmul.f32 %v324, 0.5
  %v429 = vmul.f32 %v327, 0.5
  %v430 = vmul.f32 %v332, 0.5
  %v431 = vmul.f32 %v335, 0.5
  %v432 = vmul.f32 %v340, 0.5
  %v433 = vmul.f32 %v343, 0.5
  %v434 = vmul.f32 %v348, 0.5
  %v435 = vmul.f32 %v351, 0.5
  %v436 = vmul.f32 %v356, 0.5
  %v437 = vmul.f32 %v359, 0.5
  %v438 = vmul.f32 %v364, 0.5
  %v439 = vmul.f32 %v367, 0.5
  %v440 = vmul.f32 %v372, 0.5
  %v441 = vmul.f32 %v375, 0.5
  %v442 = vpack.c.bf16 %v255, %v252
  %v443 = vpack.c.bf16 %v263, %v260
  %v444 = vpack.c.bf16 %v271, %v268
  %v445 = vpack.c.bf16 %v279, %v276
  %v446 = vpack.c.bf16 %v287, %v284
  %v447 = vpack.c.bf16 %v295, %v292
  %v448 = vpack.c.bf16 %v303, %v300
  %v449 = vpack.c.bf16 %v311, %v308
  %v450 = vpack.c.bf16 %v319, %v316
  %v451 = vpack.c.bf16 %v327, %v324
  %v452 = vpack.c.bf16 %v335, %v332
  %v453 = vpack.c.bf16 %v343, %v340
  %v454 = vpack.c.bf16 %v351, %v348
  %v455 = vpack.c.bf16 %v359, %v356
  %v456 = vpack.c.bf16 %v367, %v364
  %v457 = vpack.c.bf16 %v375, %v372
  %v490 = vunpack.c.l.b16 %v378
  %v491 = vunpack.c.h.b16 %v378
  %v492 = vunpack.c.l.b16 %v379
  %v493 = vunpack.c.h.b16 %v379
  %v494 = vunpack.c.l.b16 %v380
  %v495 = vunpack.c.h.b16 %v380
  %v496 = vunpack.c.l.b16 %v381
  %v497 = vunpack.c.h.b16 %v381
  %v498 = vunpack.c.l.b16 %v382
  %v499 = vunpack.c.h.b16 %v382
  %v500 = vunpack.c.l.b16 %v383
  %v501 = vunpack.c.h.b16 %v383
  %v502 = vunpack.c.l.b16 %v384
  %v503 = vunpack.c.h.b16 %v384
  %v504 = vunpack.c.l.b16 %v385
  %v505 = vunpack.c.h.b16 %v385
  %v506 = vunpack.c.l.b16 %v386
  %v507 = vunpack.c.h.b16 %v386
  %v508 = vunpack.c.l.b16 %v387
  %v509 = vunpack.c.h.b16 %v387
  %v510 = vunpack.c.l.b16 %v388
  %v511 = vunpack.c.h.b16 %v388
  %v512 = vunpack.c.l.b16 %v389
  %v513 = vunpack.c.h.b16 %v389
  %v514 = vunpack.c.l.b16 %v390
  %v515 = vunpack.c.h.b16 %v390
  %v516 = vunpack.c.l.b16 %v391
  %v517 = vunpack.c.h.b16 %v391
  %v518 = vunpack.c.l.b16 %v392
  %v519 = vunpack.c.h.b16 %v392
  %v520 = vunpack.c.l.b16 %v393
  %v521 = vunpack.c.h.b16 %v393
  %v522 = vunpack.c.l.b16 %v394
  %v523 = vunpack.c.h.b16 %v394
  %v524 = vunpack.c.l.b16 %v395
  %v525 = vunpack.c.h.b16 %v395
  %v526 = vunpack.c.l.b16 %v396
  %v527 = vunpack.c.h.b16 %v396
  %v528 = vunpack.c.l.b16 %v397
  %v529 = vunpack.c.h.b16 %v397
  %v530 = vunpack.c.l.b16 %v398
  %v531 = vunpack.c.h.b16 %v398
  %v532 = vunpack.c.l.b16 %v399
  %v533 = vunpack.c.h.b16 %v399
  %v534 = vunpack.c.l.b16 %v400
  %v535 = vunpack.c.h.b16 %v400
  %v536 = vunpack.c.l.b16 %v401
  %v537 = vunpack.c.h.b16 %v401
  %v538 = vunpack.c.l.b16 %v402
  %v539 = vunpack.c.h.b16 %v402
  %v540 = vunpack.c.l.b16 %v403
  %v541 = vunpack.c.h.b16 %v403
  %v542 = vunpack.c.l.b16 %v404
  %v543 = vunpack.c.h.b16 %v404
  %v544 = vunpack.c.l.b16 %v405
  %v545 = vunpack.c.h.b16 %v405
  %v546 = vunpack.c.l.b16 %v406
  %v547 = vunpack.c.h.b16 %v406
  %v548 = vunpack.c.l.b16 %v407
  %v549 = vunpack.c.h.b16 %v407
  %v550 = vunpack.c.l.b16 %v408
  %v551 = vunpack.c.h.b16 %v408
  %v552 = vunpack.c.l.b16 %v409
  %v553 = vunpack.c.h.b16 %v409
  %v554 = vpack.c.b16 %v492, %v490
  %v555 = vpack.c.b16 %v493, %v491
  %v556 = vpack.c.b16 %v496, %v494
  %v557 = vpack.c.b16 %v497, %v495
  %v558 = vpack.c.b16 %v500, %v498
  %v559 = vpack.c.b16 %v501, %v499
  %v560 = vpack.c.b16 %v504, %v502
  %v561 = vpack.c.b16 %v505, %v503
  %v562 = vpack.c.b16 %v508, %v506
  %v563 = vpack.c.b16 %v509, %v507
  %v564 = vpack.c.b16 %v512, %v510
  %v565 = vpack.c.b16 %v513, %v511
  %v566 = vpack.c.b16 %v516, %v514
  %v567 = vpack.c.b16 %v517, %v515
  %v568 = vpack.c.b16 %v520, %v518
  %v569 = vpack.c.b16 %v521, %v519
  %v570 = vpack.c.b16 %v524, %v522
  %v571 = vpack.c.b16 %v525, %v523
  %v572 = vpack.c.b16 %v528, %v526
  %v573 = vpack.c.b16 %v529, %v527
  %v574 = vpack.c.b16 %v532, %v530
  %v575 = vpack.c.b16 %v533, %v531
  %v576 = vpack.c.b16 %v536, %v534
  %v577 = vpack.c.b16 %v537, %v535
  %v578 = vpack.c.b16 %v540, %v538
  %v579 = vpack.c.b16 %v541, %v539
  %v580 = vpack.c.b16 %v544, %v542
  %v581 = vpack.c.b16 %v545, %v543
  %v582 = vpack.c.b16 %v548, %v546
  %v583 = vpack.c.b16 %v549, %v547
  %v584 = vpack.c.b16 %v552, %v550
  %v585 = vpack.c.b16 %v553, %v551
  %618 = vmatprep.subr.bf16.mxu0 0
  %619 = vmatpush1.bf16.msra.mxu0 %v442
  %620 = vmatprep.subr.bf16.mxu0 0
  %621 = vmatpush1.bf16.msra.mxu0 %v443
  %622 = vmatprep.subr.bf16.mxu0 0
  %623 = vmatpush1.bf16.msra.mxu0 %v444
  %624 = vmatprep.subr.bf16.mxu0 0
  %625 = vmatpush1.bf16.msra.mxu0 %v445
  %626 = vmatprep.subr.bf16.mxu0 0
  %627 = vmatpush1.bf16.msra.mxu0 %v446
  %628 = vmatprep.subr.bf16.mxu0 0
  %629 = vmatpush1.bf16.msra.mxu0 %v447
  %630 = vmatprep.subr.bf16.mxu0 0
  %631 = vmatpush1.bf16.msra.mxu0 %v448
  %632 = vmatprep.subr.bf16.mxu0 0
  %633 = vmatpush1.bf16.msra.mxu0 %v449
  %634 = vmatprep.subr.bf16.mxu0 0
  %635 = vmatpush1.bf16.msra.mxu0 %v450
  %636 = vmatprep.subr.bf16.mxu0 0
  %637 = vmatpush1.bf16.msra.mxu0 %v451
  %638 = vmatprep.subr.bf16.mxu0 0
  %639 = vmatpush1.bf16.msra.mxu0 %v452
  %640 = vmatprep.subr.bf16.mxu0 0
  %641 = vmatpush1.bf16.msra.mxu0 %v453
  %642 = vmatprep.subr.bf16.mxu0 0
  %643 = vmatpush1.bf16.msra.mxu0 %v454
  %644 = vmatprep.subr.bf16.mxu0 0
  %645 = vmatpush1.bf16.msra.mxu0 %v455
  %646 = vmatprep.subr.bf16.mxu0 0
  %647 = vmatpush1.bf16.msra.mxu0 %v456
  %648 = vmatprep.subr.bf16.mxu0 0
  %649 = vmatpush1.bf16.msra.mxu0 %v457
  %650 = vmatprep.mubr.bf16.mxu0 %v555
  %651 = vmatmul.mubr.bf16.gmra.mrb[0].mxu0 %v554
  %v652 = vpop.f32.mrb[0].mxu0
  %v653 = vadd.f32 0.0, %v652
  %v654 = vpop.f32.mrb[0].mxu0
  %v655 = vpop.f32.mrb[0].mxu0
  %v656 = vadd.f32 0.0, %v655
  %v657 = vpop.f32.mrb[0].mxu0
  %658 = vmatprep.mubr.bf16.mxu0 %v557
  %659 = vmatmul.mubr.bf16.gmra.mrb[0].mxu0 %v556
  %v660 = vpop.f32.mrb[0].mxu0
  %v661 = vadd.f32 0.0, %v660
  %v662 = vpop.f32.mrb[0].mxu0
  %v663 = vpop.f32.mrb[0].mxu0
  %v664 = vadd.f32 0.0, %v663
  %v665 = vpop.f32.mrb[0].mxu0
  %666 = vmatprep.mubr.bf16.mxu0 %v559
  %667 = vmatmul.mubr.bf16.gmra.mrb[0].mxu0 %v558
  %v668 = vpop.f32.mrb[0].mxu0
  %v669 = vadd.f32 0.0, %v668
  %v670 = vpop.f32.mrb[0].mxu0
  %v671 = vpop.f32.mrb[0].mxu0
  %v672 = vadd.f32 0.0, %v671
  %v673 = vpop.f32.mrb[0].mxu0
  %674 = vmatprep.mubr.bf16.mxu0 %v561
  %675 = vmatmul.mubr.bf16.gmra.mrb[0].mxu0 %v560
  %v676 = vpop.f32.mrb[0].mxu0
  %v677 = vadd.f32 0.0, %v676
  %v678 = vpop.f32.mrb[0].mxu0
  %v679 = vpop.f32.mrb[0].mxu0
  %v680 = vadd.f32 0.0, %v679
  %v681 = vpop.f32.mrb[0].mxu0
  %682 = vmatprep.mubr.bf16.mxu0 %v563
  %683 = vmatmul.mubr.bf16.gmra.mrb[0].mxu0 %v562
  %v684 = vpop.f32.mrb[0].mxu0
  %v685 = vadd.f32 0.0, %v684
  %v686 = vpop.f32.mrb[0].mxu0
  %v687 = vpop.f32.mrb[0].mxu0
  %v688 = vadd.f32 0.0, %v687
  %v689 = vpop.f32.mrb[0].mxu0
  %690 = vmatprep.mubr.bf16.mxu0 %v565
  %691 = vmatmul.mubr.bf16.gmra.mrb[0].mxu0 %v564
  %v692 = vpop.f32.mrb[0].mxu0
  %v693 = vadd.f32 0.0, %v692
  %v694 = vpop.f32.mrb[0].mxu0
  %v695 = vpop.f32.mrb[0].mxu0
  %v696 = vadd.f32 0.0, %v695
  %v697 = vpop.f32.mrb[0].mxu0
  %698 = vmatprep.mubr.bf16.mxu0 %v567
  %699 = vmatmul.mubr.bf16.gmra.mrb[0].mxu0 %v566
  %v700 = vpop.f32.mrb[0].mxu0
  %v701 = vadd.f32 0.0, %v700
  %v702 = vpop.f32.mrb[0].mxu0
  %v703 = vpop.f32.mrb[0].mxu0
  %v704 = vadd.f32 0.0, %v703
  %v705 = vpop.f32.mrb[0].mxu0
  %706 = vmatprep.mubr.bf16.mxu0 %v569
  %707 = vmatmul.mubr.bf16.gmra.mrb[0].mxu0 %v568
  %v708 = vpop.f32.mrb[0].mxu0
  %v709 = vadd.f32 0.0, %v708
  %v710 = vpop.f32.mrb[0].mxu0
  %v711 = vpop.f32.mrb[0].mxu0
  %v712 = vadd.f32 0.0, %v711
  %v713 = vpop.f32.mrb[0].mxu0
  %714 = vmatprep.mubr.bf16.mxu0 %v571
  %715 = vmatmul.mubr.bf16.gmra.mrb[0].mxu0 %v570
  %v716 = vpop.f32.mrb[0].mxu0
  %v717 = vadd.f32 0.0, %v716
  %v718 = vpop.f32.mrb[0].mxu0
  %v719 = vpop.f32.mrb[0].mxu0
  %v720 = vadd.f32 0.0, %v719
  %v721 = vpop.f32.mrb[0].mxu0
  %722 = vmatprep.mubr.bf16.mxu0 %v573
  %723 = vmatmul.mubr.bf16.gmra.mrb[0].mxu0 %v572
  %v724 = vpop.f32.mrb[0].mxu0
  %v725 = vadd.f32 0.0, %v724
  %v726 = vpop.f32.mrb[0].mxu0
  %v727 = vpop.f32.mrb[0].mxu0
  %v728 = vadd.f32 0.0, %v727
  %v729 = vpop.f32.mrb[0].mxu0
  %730 = vmatprep.mubr.bf16.mxu0 %v575
  %731 = vmatmul.mubr.bf16.gmra.mrb[0].mxu0 %v574
  %v732 = vpop.f32.mrb[0].mxu0
  %v733 = vadd.f32 0.0, %v732
  %v734 = vpop.f32.mrb[0].mxu0
  %v735 = vpop.f32.mrb[0].mxu0
  %v736 = vadd.f32 0.0, %v735
  %v737 = vpop.f32.mrb[0].mxu0
  %738 = vmatprep.mubr.bf16.mxu0 %v577
  %739 = vmatmul.mubr.bf16.gmra.mrb[0].mxu0 %v576
  %v740 = vpop.f32.mrb[0].mxu0
  %v741 = vadd.f32 0.0, %v740
  %v742 = vpop.f32.mrb[0].mxu0
  %v743 = vpop.f32.mrb[0].mxu0
  %v744 = vadd.f32 0.0, %v743
  %v745 = vpop.f32.mrb[0].mxu0
  %746 = vmatprep.mubr.bf16.mxu0 %v579
  %747 = vmatmul.mubr.bf16.gmra.mrb[0].mxu0 %v578
  %v748 = vpop.f32.mrb[0].mxu0
  %v749 = vadd.f32 0.0, %v748
  %v750 = vpop.f32.mrb[0].mxu0
  %v751 = vpop.f32.mrb[0].mxu0
  %v752 = vadd.f32 0.0, %v751
  %v753 = vpop.f32.mrb[0].mxu0
  %754 = vmatprep.mubr.bf16.mxu0 %v581
  %755 = vmatmul.mubr.bf16.gmra.mrb[0].mxu0 %v580
  %v756 = vpop.f32.mrb[0].mxu0
  %v757 = vadd.f32 0.0, %v756
  %v758 = vpop.f32.mrb[0].mxu0
  %v759 = vpop.f32.mrb[0].mxu0
  %v760 = vadd.f32 0.0, %v759
  %v761 = vpop.f32.mrb[0].mxu0
  %762 = vmatprep.mubr.bf16.mxu0 %v583
  %763 = vmatmul.mubr.bf16.gmra.mrb[0].mxu0 %v582
  %v764 = vpop.f32.mrb[0].mxu0
  %v765 = vadd.f32 0.0, %v764
  %v766 = vpop.f32.mrb[0].mxu0
  %v767 = vpop.f32.mrb[0].mxu0
  %v768 = vadd.f32 0.0, %v767
  %v769 = vpop.f32.mrb[0].mxu0
  %770 = vmatprep.mubr.bf16.mxu0 %v585
  %771 = vmatmul.mubr.bf16.gmra.mrb[0].mxu0 %v584
  %v772 = vpop.f32.mrb[0].mxu0
  %v773 = vadd.f32 0.0, %v772
  %v774 = vpop.f32.mrb[0].mxu0
  %v775 = vpop.f32.mrb[0].mxu0
  %v776 = vadd.f32 0.0, %v775
  %v777 = vpop.f32.mrb[0].mxu0
  %778 = vdwg.mxu0
  %v779 = vmul.f32 %v653, 0.5
  %v780 = vmul.f32 %v656, 0.5
  %v781 = vmul.f32 %v661, 0.5
  %v782 = vmul.f32 %v664, 0.5
  %v783 = vmul.f32 %v669, 0.5
  %v784 = vmul.f32 %v672, 0.5
  %v785 = vmul.f32 %v677, 0.5
  %v786 = vmul.f32 %v680, 0.5
  %v787 = vmul.f32 %v685, 0.5
  %v788 = vmul.f32 %v688, 0.5
  %v789 = vmul.f32 %v693, 0.5
  %v790 = vmul.f32 %v696, 0.5
  %v791 = vmul.f32 %v701, 0.5
  %v792 = vmul.f32 %v704, 0.5
  %v793 = vmul.f32 %v709, 0.5
  %v794 = vmul.f32 %v712, 0.5
  %v795 = vmul.f32 %v717, 0.5
  %v796 = vmul.f32 %v720, 0.5
  %v797 = vmul.f32 %v725, 0.5
  %v798 = vmul.f32 %v728, 0.5
  %v799 = vmul.f32 %v733, 0.5
  %v800 = vmul.f32 %v736, 0.5
  %v801 = vmul.f32 %v741, 0.5
  %v802 = vmul.f32 %v744, 0.5
  %v803 = vmul.f32 %v749, 0.5
  %v804 = vmul.f32 %v752, 0.5
  %v805 = vmul.f32 %v757, 0.5
  %v806 = vmul.f32 %v760, 0.5
  %v807 = vmul.f32 %v765, 0.5
  %v808 = vmul.f32 %v768, 0.5
  %v809 = vmul.f32 %v773, 0.5
  %v810 = vmul.f32 %v776, 0.5
  %v811 = vadd.f32 %v779, %v410
  %v812 = vadd.f32 %v780, %v411
  %v813 = vadd.f32 %v781, %v412
  %v814 = vadd.f32 %v782, %v413
  %v815 = vadd.f32 %v783, %v414
  %v816 = vadd.f32 %v784, %v415
  %v817 = vadd.f32 %v785, %v416
  %v818 = vadd.f32 %v786, %v417
  %v819 = vadd.f32 %v787, %v418
  %v820 = vadd.f32 %v788, %v419
  %v821 = vadd.f32 %v789, %v420
  %v822 = vadd.f32 %v790, %v421
  %v823 = vadd.f32 %v791, %v422
  %v824 = vadd.f32 %v792, %v423
  %v825 = vadd.f32 %v793, %v424
  %v826 = vadd.f32 %v794, %v425
  %v827 = vadd.f32 %v795, %v426
  %v828 = vadd.f32 %v796, %v427
  %v829 = vadd.f32 %v797, %v428
  %v830 = vadd.f32 %v798, %v429
  %v831 = vadd.f32 %v799, %v430
  %v832 = vadd.f32 %v800, %v431
  %v833 = vadd.f32 %v801, %v432
  %v834 = vadd.f32 %v802, %v433
  %v835 = vadd.f32 %v803, %v434
  %v836 = vadd.f32 %v804, %v435
  %v837 = vadd.f32 %v805, %v436
  %v838 = vadd.f32 %v806, %v437
  %v839 = vadd.f32 %v807, %v438
  %v840 = vadd.f32 %v808, %v439
  %v841 = vadd.f32 %v809, %v440
  %v842 = vadd.f32 %v810, %v441
  %v843 = vpack.c.bf16 %v812, %v811
  %v844 = vpack.c.bf16 %v814, %v813
  %v845 = vpack.c.bf16 %v816, %v815
  %v846 = vpack.c.bf16 %v818, %v817
  %v847 = vpack.c.bf16 %v820, %v819
  %v848 = vpack.c.bf16 %v822, %v821
  %v849 = vpack.c.bf16 %v824, %v823
  %v850 = vpack.c.bf16 %v826, %v825
  %v851 = vpack.c.bf16 %v828, %v827
  %v852 = vpack.c.bf16 %v830, %v829
  %v853 = vpack.c.bf16 %v832, %v831
  %v854 = vpack.c.bf16 %v834, %v833
  %v855 = vpack.c.bf16 %v836, %v835
  %v856 = vpack.c.bf16 %v838, %v837
  %v857 = vpack.c.bf16 %v840, %v839
  %v858 = vpack.c.bf16 %v842, %v841
  %859 = vmatprep.subr.bf16.mxu0 0
  %860 = vmatpush1.bf16.msra.mxu0 %v843
  %861 = vmatprep.subr.bf16.mxu0 0
  %862 = vmatpush1.bf16.msra.mxu0 %v844
  %863 = vmatprep.subr.bf16.mxu0 0
  %864 = vmatpush1.bf16.msra.mxu0 %v845
  %865 = vmatprep.subr.bf16.mxu0 0
  %866 = vmatpush1.bf16.msra.mxu0 %v846
  %867 = vmatprep.subr.bf16.mxu0 0
  %868 = vmatpush1.bf16.msra.mxu0 %v847
  %869 = vmatprep.subr.bf16.mxu0 0
  %870 = vmatpush1.bf16.msra.mxu0 %v848
  %871 = vmatprep.subr.bf16.mxu0 0
  %872 = vmatpush1.bf16.msra.mxu0 %v849
  %873 = vmatprep.subr.bf16.mxu0 0
  %874 = vmatpush1.bf16.msra.mxu0 %v850
  %875 = vmatprep.subr.bf16.mxu0 0
  %876 = vmatpush1.bf16.msra.mxu0 %v851
  %877 = vmatprep.subr.bf16.mxu0 0
  %878 = vmatpush1.bf16.msra.mxu0 %v852
  %879 = vmatprep.subr.bf16.mxu0 0
  %880 = vmatpush1.bf16.msra.mxu0 %v853
  %881 = vmatprep.subr.bf16.mxu0 0
  %882 = vmatpush1.bf16.msra.mxu0 %v854
  %883 = vmatprep.subr.bf16.mxu0 0
  %884 = vmatpush1.bf16.msra.mxu0 %v855
  %885 = vmatprep.subr.bf16.mxu0 0
  %886 = vmatpush1.bf16.msra.mxu0 %v856
  %887 = vmatprep.subr.bf16.mxu0 0
  %888 = vmatpush1.bf16.msra.mxu0 %v857
  %889 = vmatprep.subr.bf16.mxu0 0
  %890 = vmatpush1.bf16.msra.mxu0 %v858
  %891 = vmatprep.mubr.bf16.mxu0 %v555
  %892 = vmatmul.mubr.bf16.gmra.mrb[0].mxu0 %v554
  %v893 = vpop.f32.mrb[0].mxu0
  %v894 = vadd.f32 0.0, %v893
  %v895 = vpop.f32.mrb[0].mxu0
  %v896 = vpop.f32.mrb[0].mxu0
  %v897 = vadd.f32 0.0, %v896
  %v898 = vpop.f32.mrb[0].mxu0
  %899 = vmatprep.mubr.bf16.mxu0 %v557
  %900 = vmatmul.mubr.bf16.gmra.mrb[0].mxu0 %v556
  %v901 = vpop.f32.mrb[0].mxu0
  %v902 = vadd.f32 0.0, %v901
  %v903 = vpop.f32.mrb[0].mxu0
  %v904 = vpop.f32.mrb[0].mxu0
  %v905 = vadd.f32 0.0, %v904
  %v906 = vpop.f32.mrb[0].mxu0
  %907 = vmatprep.mubr.bf16.mxu0 %v559
  %908 = vmatmul.mubr.bf16.gmra.mrb[0].mxu0 %v558
  %v909 = vpop.f32.mrb[0].mxu0
  %v910 = vadd.f32 0.0, %v909
  %v911 = vpop.f32.mrb[0].mxu0
  %v912 = vpop.f32.mrb[0].mxu0
  %v913 = vadd.f32 0.0, %v912
  %v914 = vpop.f32.mrb[0].mxu0
  %915 = vmatprep.mubr.bf16.mxu0 %v561
  %916 = vmatmul.mubr.bf16.gmra.mrb[0].mxu0 %v560
  %v917 = vpop.f32.mrb[0].mxu0
  %v918 = vadd.f32 0.0, %v917
  %v919 = vpop.f32.mrb[0].mxu0
  %v920 = vpop.f32.mrb[0].mxu0
  %v921 = vadd.f32 0.0, %v920
  %v922 = vpop.f32.mrb[0].mxu0
  %923 = vmatprep.mubr.bf16.mxu0 %v563
  %924 = vmatmul.mubr.bf16.gmra.mrb[0].mxu0 %v562
  %v925 = vpop.f32.mrb[0].mxu0
  %v926 = vadd.f32 0.0, %v925
  %v927 = vpop.f32.mrb[0].mxu0
  %v928 = vpop.f32.mrb[0].mxu0
  %v929 = vadd.f32 0.0, %v928
  %v930 = vpop.f32.mrb[0].mxu0
  %931 = vmatprep.mubr.bf16.mxu0 %v565
  %932 = vmatmul.mubr.bf16.gmra.mrb[0].mxu0 %v564
  %v933 = vpop.f32.mrb[0].mxu0
  %v934 = vadd.f32 0.0, %v933
  %v935 = vpop.f32.mrb[0].mxu0
  %v936 = vpop.f32.mrb[0].mxu0
  %v937 = vadd.f32 0.0, %v936
  %v938 = vpop.f32.mrb[0].mxu0
  %939 = vmatprep.mubr.bf16.mxu0 %v567
  %940 = vmatmul.mubr.bf16.gmra.mrb[0].mxu0 %v566
  %v941 = vpop.f32.mrb[0].mxu0
  %v942 = vadd.f32 0.0, %v941
  %v943 = vpop.f32.mrb[0].mxu0
  %v944 = vpop.f32.mrb[0].mxu0
  %v945 = vadd.f32 0.0, %v944
  %v946 = vpop.f32.mrb[0].mxu0
  %947 = vmatprep.mubr.bf16.mxu0 %v569
  %948 = vmatmul.mubr.bf16.gmra.mrb[0].mxu0 %v568
  %v949 = vpop.f32.mrb[0].mxu0
  %v950 = vadd.f32 0.0, %v949
  %v951 = vpop.f32.mrb[0].mxu0
  %v952 = vpop.f32.mrb[0].mxu0
  %v953 = vadd.f32 0.0, %v952
  %v954 = vpop.f32.mrb[0].mxu0
  %955 = vmatprep.mubr.bf16.mxu0 %v571
  %956 = vmatmul.mubr.bf16.gmra.mrb[0].mxu0 %v570
  %v957 = vpop.f32.mrb[0].mxu0
  %v958 = vadd.f32 0.0, %v957
  %v959 = vpop.f32.mrb[0].mxu0
  %v960 = vpop.f32.mrb[0].mxu0
  %v961 = vadd.f32 0.0, %v960
  %v962 = vpop.f32.mrb[0].mxu0
  %963 = vmatprep.mubr.bf16.mxu0 %v573
  %964 = vmatmul.mubr.bf16.gmra.mrb[0].mxu0 %v572
  %v965 = vpop.f32.mrb[0].mxu0
  %v966 = vadd.f32 0.0, %v965
  %v967 = vpop.f32.mrb[0].mxu0
  %v968 = vpop.f32.mrb[0].mxu0
  %v969 = vadd.f32 0.0, %v968
  %v970 = vpop.f32.mrb[0].mxu0
  %971 = vmatprep.mubr.bf16.mxu0 %v575
  %972 = vmatmul.mubr.bf16.gmra.mrb[0].mxu0 %v574
  %v973 = vpop.f32.mrb[0].mxu0
  %v974 = vadd.f32 0.0, %v973
  %v975 = vpop.f32.mrb[0].mxu0
  %v976 = vpop.f32.mrb[0].mxu0
  %v977 = vadd.f32 0.0, %v976
  %v978 = vpop.f32.mrb[0].mxu0
  %979 = vmatprep.mubr.bf16.mxu0 %v577
  %980 = vmatmul.mubr.bf16.gmra.mrb[0].mxu0 %v576
  %v981 = vpop.f32.mrb[0].mxu0
  %v982 = vadd.f32 0.0, %v981
  %v983 = vpop.f32.mrb[0].mxu0
  %v984 = vpop.f32.mrb[0].mxu0
  %v985 = vadd.f32 0.0, %v984
  %v986 = vpop.f32.mrb[0].mxu0
  %987 = vmatprep.mubr.bf16.mxu0 %v579
  %988 = vmatmul.mubr.bf16.gmra.mrb[0].mxu0 %v578
  %v989 = vpop.f32.mrb[0].mxu0
  %v990 = vadd.f32 0.0, %v989
  %v991 = vpop.f32.mrb[0].mxu0
  %v992 = vpop.f32.mrb[0].mxu0
  %v993 = vadd.f32 0.0, %v992
  %v994 = vpop.f32.mrb[0].mxu0
  %995 = vmatprep.mubr.bf16.mxu0 %v581
  %996 = vmatmul.mubr.bf16.gmra.mrb[0].mxu0 %v580
  %v997 = vpop.f32.mrb[0].mxu0
  %v998 = vadd.f32 0.0, %v997
  %v999 = vpop.f32.mrb[0].mxu0
  %v1000 = vpop.f32.mrb[0].mxu0
  %v1001 = vadd.f32 0.0, %v1000
  %v1002 = vpop.f32.mrb[0].mxu0
  %1003 = vmatprep.mubr.bf16.mxu0 %v583
  %1004 = vmatmul.mubr.bf16.gmra.mrb[0].mxu0 %v582
  %v1005 = vpop.f32.mrb[0].mxu0
  %v1006 = vadd.f32 0.0, %v1005
  %v1007 = vpop.f32.mrb[0].mxu0
  %v1008 = vpop.f32.mrb[0].mxu0
  %v1009 = vadd.f32 0.0, %v1008
  %v1010 = vpop.f32.mrb[0].mxu0
  %1011 = vmatprep.mubr.bf16.mxu0 %v585
  %1012 = vmatmul.mubr.bf16.gmra.mrb[0].mxu0 %v584
  %v1013 = vpop.f32.mrb[0].mxu0
  %v1014 = vadd.f32 0.0, %v1013
  %v1015 = vpop.f32.mrb[0].mxu0
  %v1016 = vpop.f32.mrb[0].mxu0
  %v1017 = vadd.f32 0.0, %v1016
  %v1018 = vpop.f32.mrb[0].mxu0
  %1019 = vdwg.mxu0
  %v1020 = vmul.f32 %v894, 0.5
  %v1021 = vmul.f32 %v897, 0.5
  %v1022 = vmul.f32 %v902, 0.5
  %v1023 = vmul.f32 %v905, 0.5
  %v1024 = vmul.f32 %v910, 0.5
  %v1025 = vmul.f32 %v913, 0.5
  %v1026 = vmul.f32 %v918, 0.5
  %v1027 = vmul.f32 %v921, 0.5
  %v1028 = vmul.f32 %v926, 0.5
  %v1029 = vmul.f32 %v929, 0.5
  %v1030 = vmul.f32 %v934, 0.5
  %v1031 = vmul.f32 %v937, 0.5
  %v1032 = vmul.f32 %v942, 0.5
  %v1033 = vmul.f32 %v945, 0.5
  %v1034 = vmul.f32 %v950, 0.5
  %v1035 = vmul.f32 %v953, 0.5
  %v1036 = vmul.f32 %v958, 0.5
  %v1037 = vmul.f32 %v961, 0.5
  %v1038 = vmul.f32 %v966, 0.5
  %v1039 = vmul.f32 %v969, 0.5
  %v1040 = vmul.f32 %v974, 0.5
  %v1041 = vmul.f32 %v977, 0.5
  %v1042 = vmul.f32 %v982, 0.5
  %v1043 = vmul.f32 %v985, 0.5
  %v1044 = vmul.f32 %v990, 0.5
  %v1045 = vmul.f32 %v993, 0.5
  %v1046 = vmul.f32 %v998, 0.5
  %v1047 = vmul.f32 %v1001, 0.5
  %v1048 = vmul.f32 %v1006, 0.5
  %v1049 = vmul.f32 %v1009, 0.5
  %v1050 = vmul.f32 %v1014, 0.5
  %v1051 = vmul.f32 %v1017, 0.5
  %v1052 = vadd.f32 %v1020, %v410
  %v1053 = vadd.f32 %v1021, %v411
  %v1054 = vadd.f32 %v1022, %v412
  %v1055 = vadd.f32 %v1023, %v413
  %v1056 = vadd.f32 %v1024, %v414
  %v1057 = vadd.f32 %v1025, %v415
  %v1058 = vadd.f32 %v1026, %v416
  %v1059 = vadd.f32 %v1027, %v417
  %v1060 = vadd.f32 %v1028, %v418
  %v1061 = vadd.f32 %v1029, %v419
  %v1062 = vadd.f32 %v1030, %v420
  %v1063 = vadd.f32 %v1031, %v421
  %v1064 = vadd.f32 %v1032, %v422
  %v1065 = vadd.f32 %v1033, %v423
  %v1066 = vadd.f32 %v1034, %v424
  %v1067 = vadd.f32 %v1035, %v425
  %v1068 = vadd.f32 %v1036, %v426
  %v1069 = vadd.f32 %v1037, %v427
  %v1070 = vadd.f32 %v1038, %v428
  %v1071 = vadd.f32 %v1039, %v429
  %v1072 = vadd.f32 %v1040, %v430
  %v1073 = vadd.f32 %v1041, %v431
  %v1074 = vadd.f32 %v1042, %v432
  %v1075 = vadd.f32 %v1043, %v433
  %v1076 = vadd.f32 %v1044, %v434
  %v1077 = vadd.f32 %v1045, %v435
  %v1078 = vadd.f32 %v1046, %v436
  %v1079 = vadd.f32 %v1047, %v437
  %v1080 = vadd.f32 %v1048, %v438
  %v1081 = vadd.f32 %v1049, %v439
  %v1082 = vadd.f32 %v1050, %v440
  %v1083 = vadd.f32 %v1051, %v441
  %v1084 = vpack.c.bf16 %v1053, %v1052
  %v1085 = vpack.c.bf16 %v1055, %v1054
  %v1086 = vpack.c.bf16 %v1057, %v1056
  %v1087 = vpack.c.bf16 %v1059, %v1058
  %v1088 = vpack.c.bf16 %v1061, %v1060
  %v1089 = vpack.c.bf16 %v1063, %v1062
  %v1090 = vpack.c.bf16 %v1065, %v1064
  %v1091 = vpack.c.bf16 %v1067, %v1066
  %v1092 = vpack.c.bf16 %v1069, %v1068
  %v1093 = vpack.c.bf16 %v1071, %v1070
  %v1094 = vpack.c.bf16 %v1073, %v1072
  %v1095 = vpack.c.bf16 %v1075, %v1074
  %v1096 = vpack.c.bf16 %v1077, %v1076
  %v1097 = vpack.c.bf16 %v1079, %v1078
  %v1098 = vpack.c.bf16 %v1081, %v1080
  %v1099 = vpack.c.bf16 %v1083, %v1082
  %1100 = vmatprep.subr.bf16.mxu0 0
  %1101 = vmatpush1.bf16.msra.mxu0 %v1084
  %1102 = vmatprep.subr.bf16.mxu0 0
  %1103 = vmatpush1.bf16.msra.mxu0 %v1085
  %1104 = vmatprep.subr.bf16.mxu0 0
  %1105 = vmatpush1.bf16.msra.mxu0 %v1086
  %1106 = vmatprep.subr.bf16.mxu0 0
  %1107 = vmatpush1.bf16.msra.mxu0 %v1087
  %1108 = vmatprep.subr.bf16.mxu0 0
  %1109 = vmatpush1.bf16.msra.mxu0 %v1088
  %1110 = vmatprep.subr.bf16.mxu0 0
  %1111 = vmatpush1.bf16.msra.mxu0 %v1089
  %1112 = vmatprep.subr.bf16.mxu0 0
  %1113 = vmatpush1.bf16.msra.mxu0 %v1090
  %1114 = vmatprep.subr.bf16.mxu0 0
  %1115 = vmatpush1.bf16.msra.mxu0 %v1091
  %1116 = vmatprep.subr.bf16.mxu0 0
  %1117 = vmatpush1.bf16.msra.mxu0 %v1092
  %1118 = vmatprep.subr.bf16.mxu0 0
  %1119 = vmatpush1.bf16.msra.mxu0 %v1093
  %1120 = vmatprep.subr.bf16.mxu0 0
  %1121 = vmatpush1.bf16.msra.mxu0 %v1094
  %1122 = vmatprep.subr.bf16.mxu0 0
  %1123 = vmatpush1.bf16.msra.mxu0 %v1095
  %1124 = vmatprep.subr.bf16.mxu0 0
  %1125 = vmatpush1.bf16.msra.mxu0 %v1096
  %1126 = vmatprep.subr.bf16.mxu0 0
  %1127 = vmatpush1.bf16.msra.mxu0 %v1097
  %1128 = vmatprep.subr.bf16.mxu0 0
  %1129 = vmatpush1.bf16.msra.mxu0 %v1098
  %1130 = vmatprep.subr.bf16.mxu0 0
  %1131 = vmatpush1.bf16.msra.mxu0 %v1099
  %1132 = vmatprep.mubr.bf16.mxu0 %v555
  %1133 = vmatmul.mubr.bf16.gmra.mrb[0].mxu0 %v554
  %v1134 = vpop.f32.mrb[0].mxu0
  %v1135 = vadd.f32 0.0, %v1134
  %v1136 = vpop.f32.mrb[0].mxu0
  %v1137 = vpop.f32.mrb[0].mxu0
  %v1138 = vadd.f32 0.0, %v1137
  %v1139 = vpop.f32.mrb[0].mxu0
  %1140 = vmatprep.mubr.bf16.mxu0 %v557
  %1141 = vmatmul.mubr.bf16.gmra.mrb[0].mxu0 %v556
  %v1142 = vpop.f32.mrb[0].mxu0
  %v1143 = vadd.f32 0.0, %v1142
  %v1144 = vpop.f32.mrb[0].mxu0
  %v1145 = vpop.f32.mrb[0].mxu0
  %v1146 = vadd.f32 0.0, %v1145
  %v1147 = vpop.f32.mrb[0].mxu0
  %1148 = vmatprep.mubr.bf16.mxu0 %v559
  %1149 = vmatmul.mubr.bf16.gmra.mrb[0].mxu0 %v558
  %v1150 = vpop.f32.mrb[0].mxu0
  %v1151 = vadd.f32 0.0, %v1150
  %v1152 = vpop.f32.mrb[0].mxu0
  %v1153 = vpop.f32.mrb[0].mxu0
  %v1154 = vadd.f32 0.0, %v1153
  %v1155 = vpop.f32.mrb[0].mxu0
  %1156 = vmatprep.mubr.bf16.mxu0 %v561
  %1157 = vmatmul.mubr.bf16.gmra.mrb[0].mxu0 %v560
  %v1158 = vpop.f32.mrb[0].mxu0
  %v1159 = vadd.f32 0.0, %v1158
  %v1160 = vpop.f32.mrb[0].mxu0
  %v1161 = vpop.f32.mrb[0].mxu0
  %v1162 = vadd.f32 0.0, %v1161
  %v1163 = vpop.f32.mrb[0].mxu0
  %1164 = vmatprep.mubr.bf16.mxu0 %v563
  %1165 = vmatmul.mubr.bf16.gmra.mrb[0].mxu0 %v562
  %v1166 = vpop.f32.mrb[0].mxu0
  %v1167 = vadd.f32 0.0, %v1166
  %v1168 = vpop.f32.mrb[0].mxu0
  %v1169 = vpop.f32.mrb[0].mxu0
  %v1170 = vadd.f32 0.0, %v1169
  %v1171 = vpop.f32.mrb[0].mxu0
  %1172 = vmatprep.mubr.bf16.mxu0 %v565
  %1173 = vmatmul.mubr.bf16.gmra.mrb[0].mxu0 %v564
  %v1174 = vpop.f32.mrb[0].mxu0
  %v1175 = vadd.f32 0.0, %v1174
  %v1176 = vpop.f32.mrb[0].mxu0
  %v1177 = vpop.f32.mrb[0].mxu0
  %v1178 = vadd.f32 0.0, %v1177
  %v1179 = vpop.f32.mrb[0].mxu0
  %1180 = vmatprep.mubr.bf16.mxu0 %v567
  %1181 = vmatmul.mubr.bf16.gmra.mrb[0].mxu0 %v566
  %v1182 = vpop.f32.mrb[0].mxu0
  %v1183 = vadd.f32 0.0, %v1182
  %v1184 = vpop.f32.mrb[0].mxu0
  %v1185 = vpop.f32.mrb[0].mxu0
  %v1186 = vadd.f32 0.0, %v1185
  %v1187 = vpop.f32.mrb[0].mxu0
  %1188 = vmatprep.mubr.bf16.mxu0 %v569
  %1189 = vmatmul.mubr.bf16.gmra.mrb[0].mxu0 %v568
  %v1190 = vpop.f32.mrb[0].mxu0
  %v1191 = vadd.f32 0.0, %v1190
  %v1192 = vpop.f32.mrb[0].mxu0
  %v1193 = vpop.f32.mrb[0].mxu0
  %v1194 = vadd.f32 0.0, %v1193
  %v1195 = vpop.f32.mrb[0].mxu0
  %1196 = vmatprep.mubr.bf16.mxu0 %v571
  %1197 = vmatmul.mubr.bf16.gmra.mrb[0].mxu0 %v570
  %v1198 = vpop.f32.mrb[0].mxu0
  %v1199 = vadd.f32 0.0, %v1198
  %v1200 = vpop.f32.mrb[0].mxu0
  %v1201 = vpop.f32.mrb[0].mxu0
  %v1202 = vadd.f32 0.0, %v1201
  %v1203 = vpop.f32.mrb[0].mxu0
  %1204 = vmatprep.mubr.bf16.mxu0 %v573
  %1205 = vmatmul.mubr.bf16.gmra.mrb[0].mxu0 %v572
  %v1206 = vpop.f32.mrb[0].mxu0
  %v1207 = vadd.f32 0.0, %v1206
  %v1208 = vpop.f32.mrb[0].mxu0
  %v1209 = vpop.f32.mrb[0].mxu0
  %v1210 = vadd.f32 0.0, %v1209
  %v1211 = vpop.f32.mrb[0].mxu0
  %1212 = vmatprep.mubr.bf16.mxu0 %v575
  %1213 = vmatmul.mubr.bf16.gmra.mrb[0].mxu0 %v574
  %v1214 = vpop.f32.mrb[0].mxu0
  %v1215 = vadd.f32 0.0, %v1214
  %v1216 = vpop.f32.mrb[0].mxu0
  %v1217 = vpop.f32.mrb[0].mxu0
  %v1218 = vadd.f32 0.0, %v1217
  %v1219 = vpop.f32.mrb[0].mxu0
  %1220 = vmatprep.mubr.bf16.mxu0 %v577
  %1221 = vmatmul.mubr.bf16.gmra.mrb[0].mxu0 %v576
  %v1222 = vpop.f32.mrb[0].mxu0
  %v1223 = vadd.f32 0.0, %v1222
  %v1224 = vpop.f32.mrb[0].mxu0
  %v1225 = vpop.f32.mrb[0].mxu0
  %v1226 = vadd.f32 0.0, %v1225
  %v1227 = vpop.f32.mrb[0].mxu0
  %1228 = vmatprep.mubr.bf16.mxu0 %v579
  %1229 = vmatmul.mubr.bf16.gmra.mrb[0].mxu0 %v578
  %v1230 = vpop.f32.mrb[0].mxu0
  %v1231 = vadd.f32 0.0, %v1230
  %v1232 = vpop.f32.mrb[0].mxu0
  %v1233 = vpop.f32.mrb[0].mxu0
  %v1234 = vadd.f32 0.0, %v1233
  %v1235 = vpop.f32.mrb[0].mxu0
  %1236 = vmatprep.mubr.bf16.mxu0 %v581
  %1237 = vmatmul.mubr.bf16.gmra.mrb[0].mxu0 %v580
  %v1238 = vpop.f32.mrb[0].mxu0
  %v1239 = vadd.f32 0.0, %v1238
  %v1240 = vpop.f32.mrb[0].mxu0
  %v1241 = vpop.f32.mrb[0].mxu0
  %v1242 = vadd.f32 0.0, %v1241
  %v1243 = vpop.f32.mrb[0].mxu0
  %1244 = vmatprep.mubr.bf16.mxu0 %v583
  %1245 = vmatmul.mubr.bf16.gmra.mrb[0].mxu0 %v582
  %v1246 = vpop.f32.mrb[0].mxu0
  %v1247 = vadd.f32 0.0, %v1246
  %v1248 = vpop.f32.mrb[0].mxu0
  %v1249 = vpop.f32.mrb[0].mxu0
  %v1250 = vadd.f32 0.0, %v1249
  %v1251 = vpop.f32.mrb[0].mxu0
  %1252 = vmatprep.mubr.bf16.mxu0 %v585
  %1253 = vmatmul.mubr.bf16.gmra.mrb[0].mxu0 %v584
  %v1254 = vpop.f32.mrb[0].mxu0
  %v1255 = vadd.f32 0.0, %v1254
  %v1256 = vpop.f32.mrb[0].mxu0
  %v1257 = vpop.f32.mrb[0].mxu0
  %v1258 = vadd.f32 0.0, %v1257
  %v1259 = vpop.f32.mrb[0].mxu0
  %1260 = vdwg.mxu0
  %v1261 = vmul.f32 %v1135, 0.5
  %v1262 = vmul.f32 %v1138, 0.5
  %v1263 = vmul.f32 %v1143, 0.5
  %v1264 = vmul.f32 %v1146, 0.5
  %v1265 = vmul.f32 %v1151, 0.5
  %v1266 = vmul.f32 %v1154, 0.5
  %v1267 = vmul.f32 %v1159, 0.5
  %v1268 = vmul.f32 %v1162, 0.5
  %v1269 = vmul.f32 %v1167, 0.5
  %v1270 = vmul.f32 %v1170, 0.5
  %v1271 = vmul.f32 %v1175, 0.5
  %v1272 = vmul.f32 %v1178, 0.5
  %v1273 = vmul.f32 %v1183, 0.5
  %v1274 = vmul.f32 %v1186, 0.5
  %v1275 = vmul.f32 %v1191, 0.5
  %v1276 = vmul.f32 %v1194, 0.5
  %v1277 = vmul.f32 %v1199, 0.5
  %v1278 = vmul.f32 %v1202, 0.5
  %v1279 = vmul.f32 %v1207, 0.5
  %v1280 = vmul.f32 %v1210, 0.5
  %v1281 = vmul.f32 %v1215, 0.5
  %v1282 = vmul.f32 %v1218, 0.5
  %v1283 = vmul.f32 %v1223, 0.5
  %v1284 = vmul.f32 %v1226, 0.5
  %v1285 = vmul.f32 %v1231, 0.5
  %v1286 = vmul.f32 %v1234, 0.5
  %v1287 = vmul.f32 %v1239, 0.5
  %v1288 = vmul.f32 %v1242, 0.5
  %v1289 = vmul.f32 %v1247, 0.5
  %v1290 = vmul.f32 %v1250, 0.5
  %v1291 = vmul.f32 %v1255, 0.5
  %v1292 = vmul.f32 %v1258, 0.5
  %v1293 = vadd.f32 %v1261, %v410
  %v1294 = vadd.f32 %v1262, %v411
  %v1295 = vadd.f32 %v1263, %v412
  %v1296 = vadd.f32 %v1264, %v413
  %v1297 = vadd.f32 %v1265, %v414
  %v1298 = vadd.f32 %v1266, %v415
  %v1299 = vadd.f32 %v1267, %v416
  %v1300 = vadd.f32 %v1268, %v417
  %v1301 = vadd.f32 %v1269, %v418
  %v1302 = vadd.f32 %v1270, %v419
  %v1303 = vadd.f32 %v1271, %v420
  %v1304 = vadd.f32 %v1272, %v421
  %v1305 = vadd.f32 %v1273, %v422
  %v1306 = vadd.f32 %v1274, %v423
  %v1307 = vadd.f32 %v1275, %v424
  %v1308 = vadd.f32 %v1276, %v425
  %v1309 = vadd.f32 %v1277, %v426
  %v1310 = vadd.f32 %v1278, %v427
  %v1311 = vadd.f32 %v1279, %v428
  %v1312 = vadd.f32 %v1280, %v429
  %v1313 = vadd.f32 %v1281, %v430
  %v1314 = vadd.f32 %v1282, %v431
  %v1315 = vadd.f32 %v1283, %v432
  %v1316 = vadd.f32 %v1284, %v433
  %v1317 = vadd.f32 %v1285, %v434
  %v1318 = vadd.f32 %v1286, %v435
  %v1319 = vadd.f32 %v1287, %v436
  %v1320 = vadd.f32 %v1288, %v437
  %v1321 = vadd.f32 %v1289, %v438
  %v1322 = vadd.f32 %v1290, %v439
  %v1323 = vadd.f32 %v1291, %v440
  %v1324 = vadd.f32 %v1292, %v441
  %v1325 = vlaneseq
  %v1326 = vand.u32 %v1325, 127
  %vm1327 = vcmp.lt.s32.totalorder %v1326, 16
  %v1328 = vsel %vm1327, %v1293, -1e+30
  %v1329 = vsel %vm1327, %v1294, -1e+30
  %v1330 = vsel %vm1327, %v1295, -1e+30
  %v1331 = vsel %vm1327, %v1296, -1e+30
  %v1332 = vsel %vm1327, %v1297, -1e+30
  %v1333 = vsel %vm1327, %v1298, -1e+30
  %v1334 = vsel %vm1327, %v1299, -1e+30
  %v1335 = vsel %vm1327, %v1300, -1e+30
  %v1336 = vsel %vm1327, %v1301, -1e+30
  %v1337 = vsel %vm1327, %v1302, -1e+30
  %v1338 = vsel %vm1327, %v1303, -1e+30
  %v1339 = vsel %vm1327, %v1304, -1e+30
  %v1340 = vsel %vm1327, %v1305, -1e+30
  %v1341 = vsel %vm1327, %v1306, -1e+30
  %v1342 = vsel %vm1327, %v1307, -1e+30
  %v1343 = vsel %vm1327, %v1308, -1e+30
  %v1344 = vsel %vm1327, %v1309, -1e+30
  %v1345 = vsel %vm1327, %v1310, -1e+30
  %v1346 = vsel %vm1327, %v1311, -1e+30
  %v1347 = vsel %vm1327, %v1312, -1e+30
  %v1348 = vsel %vm1327, %v1313, -1e+30
  %v1349 = vsel %vm1327, %v1314, -1e+30
  %v1350 = vsel %vm1327, %v1315, -1e+30
  %v1351 = vsel %vm1327, %v1316, -1e+30
  %v1352 = vsel %vm1327, %v1317, -1e+30
  %v1353 = vsel %vm1327, %v1318, -1e+30
  %v1354 = vsel %vm1327, %v1319, -1e+30
  %v1355 = vsel %vm1327, %v1320, -1e+30
  %v1356 = vsel %vm1327, %v1321, -1e+30
  %v1357 = vsel %vm1327, %v1322, -1e+30
  %v1358 = vsel %vm1327, %v1323, -1e+30
  %v1359 = vsel %vm1327, %v1324, -1e+30
  %1360 = vmax.xlane.f32.xlu0 %v1328
  %v1361 = vpop.xlane.xlu0 %1360
  %1362 = vmax.xlane.f32.xlu0 %v1329
  %v1363 = vpop.xlane.xlu0 %1362
  %1364 = vmax.xlane.f32.xlu0 %v1330
  %v1365 = vpop.xlane.xlu0 %1364
  %1366 = vmax.xlane.f32.xlu0 %v1331
  %v1367 = vpop.xlane.xlu0 %1366
  %1368 = vmax.xlane.f32.xlu0 %v1332
  %v1369 = vpop.xlane.xlu0 %1368
  %1370 = vmax.xlane.f32.xlu0 %v1333
  %v1371 = vpop.xlane.xlu0 %1370
  %1372 = vmax.xlane.f32.xlu0 %v1334
  %v1373 = vpop.xlane.xlu0 %1372
  %1374 = vmax.xlane.f32.xlu0 %v1335
  %v1375 = vpop.xlane.xlu0 %1374
  %1376 = vmax.xlane.f32.xlu0 %v1336
  %v1377 = vpop.xlane.xlu0 %1376
  %1378 = vmax.xlane.f32.xlu0 %v1337
  %v1379 = vpop.xlane.xlu0 %1378
  %1380 = vmax.xlane.f32.xlu0 %v1338
  %v1381 = vpop.xlane.xlu0 %1380
  %1382 = vmax.xlane.f32.xlu0 %v1339
  %v1383 = vpop.xlane.xlu0 %1382
  %1384 = vmax.xlane.f32.xlu0 %v1340
  %v1385 = vpop.xlane.xlu0 %1384
  %1386 = vmax.xlane.f32.xlu0 %v1341
  %v1387 = vpop.xlane.xlu0 %1386
  %1388 = vmax.xlane.f32.xlu0 %v1342
  %v1389 = vpop.xlane.xlu0 %1388
  %1390 = vmax.xlane.f32.xlu0 %v1343
  %v1391 = vpop.xlane.xlu0 %1390
  %1392 = vmax.xlane.f32.xlu0 %v1344
  %v1393 = vpop.xlane.xlu0 %1392
  %1394 = vmax.xlane.f32.xlu0 %v1345
  %v1395 = vpop.xlane.xlu0 %1394
  %1396 = vmax.xlane.f32.xlu0 %v1346
  %v1397 = vpop.xlane.xlu0 %1396
  %1398 = vmax.xlane.f32.xlu0 %v1347
  %v1399 = vpop.xlane.xlu0 %1398
  %1400 = vmax.xlane.f32.xlu0 %v1348
  %v1401 = vpop.xlane.xlu0 %1400
  %1402 = vmax.xlane.f32.xlu0 %v1349
  %v1403 = vpop.xlane.xlu0 %1402
  %1404 = vmax.xlane.f32.xlu0 %v1350
  %v1405 = vpop.xlane.xlu0 %1404
  %1406 = vmax.xlane.f32.xlu0 %v1351
  %v1407 = vpop.xlane.xlu0 %1406
  %1408 = vmax.xlane.f32.xlu0 %v1352
  %v1409 = vpop.xlane.xlu0 %1408
  %1410 = vmax.xlane.f32.xlu0 %v1353
  %v1411 = vpop.xlane.xlu0 %1410
  %1412 = vmax.xlane.f32.xlu0 %v1354
  %v1413 = vpop.xlane.xlu0 %1412
  %1414 = vmax.xlane.f32.xlu0 %v1355
  %v1415 = vpop.xlane.xlu0 %1414
  %1416 = vmax.xlane.f32.xlu0 %v1356
  %v1417 = vpop.xlane.xlu0 %1416
  %1418 = vmax.xlane.f32.xlu0 %v1357
  %v1419 = vpop.xlane.xlu0 %1418
  %1420 = vmax.xlane.f32.xlu0 %v1358
  %v1421 = vpop.xlane.xlu0 %1420
  %1422 = vmax.xlane.f32.xlu0 %v1359
  %v1423 = vpop.xlane.xlu0 %1422
  %v1424 = vsub.f32 %v1293, %v1361
  %v1425 = vsub.f32 %v1294, %v1363
  %v1426 = vsub.f32 %v1295, %v1365
  %v1427 = vsub.f32 %v1296, %v1367
  %v1428 = vsub.f32 %v1297, %v1369
  %v1429 = vsub.f32 %v1298, %v1371
  %v1430 = vsub.f32 %v1299, %v1373
  %v1431 = vsub.f32 %v1300, %v1375
  %v1432 = vsub.f32 %v1301, %v1377
  %v1433 = vsub.f32 %v1302, %v1379
  %v1434 = vsub.f32 %v1303, %v1381
  %v1435 = vsub.f32 %v1304, %v1383
  %v1436 = vsub.f32 %v1305, %v1385
  %v1437 = vsub.f32 %v1306, %v1387
  %v1438 = vsub.f32 %v1307, %v1389
  %v1439 = vsub.f32 %v1308, %v1391
  %v1440 = vsub.f32 %v1309, %v1393
  %v1441 = vsub.f32 %v1310, %v1395
  %v1442 = vsub.f32 %v1311, %v1397
  %v1443 = vsub.f32 %v1312, %v1399
  %v1444 = vsub.f32 %v1313, %v1401
  %v1445 = vsub.f32 %v1314, %v1403
  %v1446 = vsub.f32 %v1315, %v1405
  %v1447 = vsub.f32 %v1316, %v1407
  %v1448 = vsub.f32 %v1317, %v1409
  %v1449 = vsub.f32 %v1318, %v1411
  %v1450 = vsub.f32 %v1319, %v1413
  %v1451 = vsub.f32 %v1320, %v1415
  %v1452 = vsub.f32 %v1321, %v1417
  %v1453 = vsub.f32 %v1322, %v1419
  %v1454 = vsub.f32 %v1323, %v1421
  %v1455 = vsub.f32 %v1324, %v1423
  %v1456 = vmul.f32 %v1424, 1.442695
  %v1457 = vpow.pop %v1456
  %v1458 = vmul.f32 %v1425, 1.442695
  %v1459 = vpow.pop %v1458
  %v1460 = vmul.f32 %v1426, 1.442695
  %v1461 = vpow.pop %v1460
  %v1462 = vmul.f32 %v1427, 1.442695
  %v1463 = vpow.pop %v1462
  %v1464 = vmul.f32 %v1428, 1.442695
  %v1465 = vpow.pop %v1464
  %v1466 = vmul.f32 %v1429, 1.442695
  %v1467 = vpow.pop %v1466
  %v1468 = vmul.f32 %v1430, 1.442695
  %v1469 = vpow.pop %v1468
  %v1470 = vmul.f32 %v1431, 1.442695
  %v1471 = vpow.pop %v1470
  %v1472 = vmul.f32 %v1432, 1.442695
  %v1473 = vpow.pop %v1472
  %v1474 = vmul.f32 %v1433, 1.442695
  %v1475 = vpow.pop %v1474
  %v1476 = vmul.f32 %v1434, 1.442695
  %v1477 = vpow.pop %v1476
  %v1478 = vmul.f32 %v1435, 1.442695
  %v1479 = vpow.pop %v1478
  %v1480 = vmul.f32 %v1436, 1.442695
  %v1481 = vpow.pop %v1480
  %v1482 = vmul.f32 %v1437, 1.442695
  %v1483 = vpow.pop %v1482
  %v1484 = vmul.f32 %v1438, 1.442695
  %v1485 = vpow.pop %v1484
  %v1486 = vmul.f32 %v1439, 1.442695
  %v1487 = vpow.pop %v1486
  %v1488 = vmul.f32 %v1440, 1.442695
  %v1489 = vpow.pop %v1488
  %v1490 = vmul.f32 %v1441, 1.442695
  %v1491 = vpow.pop %v1490
  %v1492 = vmul.f32 %v1442, 1.442695
  %v1493 = vpow.pop %v1492
  %v1494 = vmul.f32 %v1443, 1.442695
  %v1495 = vpow.pop %v1494
  %v1496 = vmul.f32 %v1444, 1.442695
  %v1497 = vpow.pop %v1496
  %v1498 = vmul.f32 %v1445, 1.442695
  %v1499 = vpow.pop %v1498
  %v1500 = vmul.f32 %v1446, 1.442695
  %v1501 = vpow.pop %v1500
  %v1502 = vmul.f32 %v1447, 1.442695
  %v1503 = vpow.pop %v1502
  %v1504 = vmul.f32 %v1448, 1.442695
  %v1505 = vpow.pop %v1504
  %v1506 = vmul.f32 %v1449, 1.442695
  %v1507 = vpow.pop %v1506
  %v1508 = vmul.f32 %v1450, 1.442695
  %v1509 = vpow.pop %v1508
  %v1510 = vmul.f32 %v1451, 1.442695
  %v1511 = vpow.pop %v1510
  %v1512 = vmul.f32 %v1452, 1.442695
  %v1513 = vpow.pop %v1512
  %v1514 = vmul.f32 %v1453, 1.442695
  %v1515 = vpow.pop %v1514
  %v1516 = vmul.f32 %v1454, 1.442695
  %v1517 = vpow.pop %v1516
  %v1518 = vmul.f32 %v1455, 1.442695
  %v1519 = vpow.pop %v1518
  %v1520 = vsel %vm1327, %v1457, 0.0
  %v1521 = vsel %vm1327, %v1459, 0.0
  %v1522 = vsel %vm1327, %v1461, 0.0
  %v1523 = vsel %vm1327, %v1463, 0.0
  %v1524 = vsel %vm1327, %v1465, 0.0
  %v1525 = vsel %vm1327, %v1467, 0.0
  %v1526 = vsel %vm1327, %v1469, 0.0
  %v1527 = vsel %vm1327, %v1471, 0.0
  %v1528 = vsel %vm1327, %v1473, 0.0
  %v1529 = vsel %vm1327, %v1475, 0.0
  %v1530 = vsel %vm1327, %v1477, 0.0
  %v1531 = vsel %vm1327, %v1479, 0.0
  %v1532 = vsel %vm1327, %v1481, 0.0
  %v1533 = vsel %vm1327, %v1483, 0.0
  %v1534 = vsel %vm1327, %v1485, 0.0
  %v1535 = vsel %vm1327, %v1487, 0.0
  %v1536 = vsel %vm1327, %v1489, 0.0
  %v1537 = vsel %vm1327, %v1491, 0.0
  %v1538 = vsel %vm1327, %v1493, 0.0
  %v1539 = vsel %vm1327, %v1495, 0.0
  %v1540 = vsel %vm1327, %v1497, 0.0
  %v1541 = vsel %vm1327, %v1499, 0.0
  %v1542 = vsel %vm1327, %v1501, 0.0
  %v1543 = vsel %vm1327, %v1503, 0.0
  %v1544 = vsel %vm1327, %v1505, 0.0
  %v1545 = vsel %vm1327, %v1507, 0.0
  %v1546 = vsel %vm1327, %v1509, 0.0
  %v1547 = vsel %vm1327, %v1511, 0.0
  %v1548 = vsel %vm1327, %v1513, 0.0
  %v1549 = vsel %vm1327, %v1515, 0.0
  %v1550 = vsel %vm1327, %v1517, 0.0
  %v1551 = vsel %vm1327, %v1519, 0.0
  %1552 = vadd.xlane.f32.xlu0 %v1520
  %v1553 = vpop.xlane.xlu0 %1552
  %1554 = vadd.xlane.f32.xlu0 %v1521
  %v1555 = vpop.xlane.xlu0 %1554
  %1556 = vadd.xlane.f32.xlu0 %v1522
  %v1557 = vpop.xlane.xlu0 %1556
  %1558 = vadd.xlane.f32.xlu0 %v1523
  %v1559 = vpop.xlane.xlu0 %1558
  %1560 = vadd.xlane.f32.xlu0 %v1524
  %v1561 = vpop.xlane.xlu0 %1560
  %1562 = vadd.xlane.f32.xlu0 %v1525
  %v1563 = vpop.xlane.xlu0 %1562
  %1564 = vadd.xlane.f32.xlu0 %v1526
  %v1565 = vpop.xlane.xlu0 %1564
  %1566 = vadd.xlane.f32.xlu0 %v1527
  %v1567 = vpop.xlane.xlu0 %1566
  %1568 = vadd.xlane.f32.xlu0 %v1528
  %v1569 = vpop.xlane.xlu0 %1568
  %1570 = vadd.xlane.f32.xlu0 %v1529
  %v1571 = vpop.xlane.xlu0 %1570
  %1572 = vadd.xlane.f32.xlu0 %v1530
  %v1573 = vpop.xlane.xlu0 %1572
  %1574 = vadd.xlane.f32.xlu0 %v1531
  %v1575 = vpop.xlane.xlu0 %1574
  %1576 = vadd.xlane.f32.xlu0 %v1532
  %v1577 = vpop.xlane.xlu0 %1576
  %1578 = vadd.xlane.f32.xlu0 %v1533
  %v1579 = vpop.xlane.xlu0 %1578
  %1580 = vadd.xlane.f32.xlu0 %v1534
  %v1581 = vpop.xlane.xlu0 %1580
  %1582 = vadd.xlane.f32.xlu0 %v1535
  %v1583 = vpop.xlane.xlu0 %1582
  %1584 = vadd.xlane.f32.xlu0 %v1536
  %v1585 = vpop.xlane.xlu0 %1584
  %1586 = vadd.xlane.f32.xlu0 %v1537
  %v1587 = vpop.xlane.xlu0 %1586
  %1588 = vadd.xlane.f32.xlu0 %v1538
  %v1589 = vpop.xlane.xlu0 %1588
  %1590 = vadd.xlane.f32.xlu0 %v1539
  %v1591 = vpop.xlane.xlu0 %1590
  %1592 = vadd.xlane.f32.xlu0 %v1540
  %v1593 = vpop.xlane.xlu0 %1592
  %1594 = vadd.xlane.f32.xlu0 %v1541
  %v1595 = vpop.xlane.xlu0 %1594
  %1596 = vadd.xlane.f32.xlu0 %v1542
  %v1597 = vpop.xlane.xlu0 %1596
  %1598 = vadd.xlane.f32.xlu0 %v1543
  %v1599 = vpop.xlane.xlu0 %1598
  %1600 = vadd.xlane.f32.xlu0 %v1544
  %v1601 = vpop.xlane.xlu0 %1600
  %1602 = vadd.xlane.f32.xlu0 %v1545
  %v1603 = vpop.xlane.xlu0 %1602
  %1604 = vadd.xlane.f32.xlu0 %v1546
  %v1605 = vpop.xlane.xlu0 %1604
  %1606 = vadd.xlane.f32.xlu0 %v1547
  %v1607 = vpop.xlane.xlu0 %1606
  %1608 = vadd.xlane.f32.xlu0 %v1548
  %v1609 = vpop.xlane.xlu0 %1608
  %1610 = vadd.xlane.f32.xlu0 %v1549
  %v1611 = vpop.xlane.xlu0 %1610
  %1612 = vadd.xlane.f32.xlu0 %v1550
  %v1613 = vpop.xlane.xlu0 %1612
  %1614 = vadd.xlane.f32.xlu0 %v1551
  %v1615 = vpop.xlane.xlu0 %1614
  %v1616 = vlog2.pop %v1553
  %v1617 = vmul.f32 %v1616, 0.6931472
  %v1618 = vlog2.pop %v1555
  %v1619 = vmul.f32 %v1618, 0.6931472
  %v1620 = vlog2.pop %v1557
  %v1621 = vmul.f32 %v1620, 0.6931472
  %v1622 = vlog2.pop %v1559
  %v1623 = vmul.f32 %v1622, 0.6931472
  %v1624 = vlog2.pop %v1561
  %v1625 = vmul.f32 %v1624, 0.6931472
  %v1626 = vlog2.pop %v1563
  %v1627 = vmul.f32 %v1626, 0.6931472
  %v1628 = vlog2.pop %v1565
  %v1629 = vmul.f32 %v1628, 0.6931472
  %v1630 = vlog2.pop %v1567
  %v1631 = vmul.f32 %v1630, 0.6931472
  %v1632 = vlog2.pop %v1569
  %v1633 = vmul.f32 %v1632, 0.6931472
  %v1634 = vlog2.pop %v1571
  %v1635 = vmul.f32 %v1634, 0.6931472
  %v1636 = vlog2.pop %v1573
  %v1637 = vmul.f32 %v1636, 0.6931472
  %v1638 = vlog2.pop %v1575
  %v1639 = vmul.f32 %v1638, 0.6931472
  %v1640 = vlog2.pop %v1577
  %v1641 = vmul.f32 %v1640, 0.6931472
  %v1642 = vlog2.pop %v1579
  %v1643 = vmul.f32 %v1642, 0.6931472
  %v1644 = vlog2.pop %v1581
  %v1645 = vmul.f32 %v1644, 0.6931472
  %v1646 = vlog2.pop %v1583
  %v1647 = vmul.f32 %v1646, 0.6931472
  %v1648 = vlog2.pop %v1585
  %v1649 = vmul.f32 %v1648, 0.6931472
  %v1650 = vlog2.pop %v1587
  %v1651 = vmul.f32 %v1650, 0.6931472
  %v1652 = vlog2.pop %v1589
  %v1653 = vmul.f32 %v1652, 0.6931472
  %v1654 = vlog2.pop %v1591
  %v1655 = vmul.f32 %v1654, 0.6931472
  %v1656 = vlog2.pop %v1593
  %v1657 = vmul.f32 %v1656, 0.6931472
  %v1658 = vlog2.pop %v1595
  %v1659 = vmul.f32 %v1658, 0.6931472
  %v1660 = vlog2.pop %v1597
  %v1661 = vmul.f32 %v1660, 0.6931472
  %v1662 = vlog2.pop %v1599
  %v1663 = vmul.f32 %v1662, 0.6931472
  %v1664 = vlog2.pop %v1601
  %v1665 = vmul.f32 %v1664, 0.6931472
  %v1666 = vlog2.pop %v1603
  %v1667 = vmul.f32 %v1666, 0.6931472
  %v1668 = vlog2.pop %v1605
  %v1669 = vmul.f32 %v1668, 0.6931472
  %v1670 = vlog2.pop %v1607
  %v1671 = vmul.f32 %v1670, 0.6931472
  %v1672 = vlog2.pop %v1609
  %v1673 = vmul.f32 %v1672, 0.6931472
  %v1674 = vlog2.pop %v1611
  %v1675 = vmul.f32 %v1674, 0.6931472
  %v1676 = vlog2.pop %v1613
  %v1677 = vmul.f32 %v1676, 0.6931472
  %v1678 = vlog2.pop %v1615
  %v1679 = vmul.f32 %v1678, 0.6931472
  %v1680 = vadd.f32 %v1617, %v1361
  %v1681 = vadd.f32 %v1619, %v1363
  %v1682 = vadd.f32 %v1621, %v1365
  %v1683 = vadd.f32 %v1623, %v1367
  %v1684 = vadd.f32 %v1625, %v1369
  %v1685 = vadd.f32 %v1627, %v1371
  %v1686 = vadd.f32 %v1629, %v1373
  %v1687 = vadd.f32 %v1631, %v1375
  %v1688 = vadd.f32 %v1633, %v1377
  %v1689 = vadd.f32 %v1635, %v1379
  %v1690 = vadd.f32 %v1637, %v1381
  %v1691 = vadd.f32 %v1639, %v1383
  %v1692 = vadd.f32 %v1641, %v1385
  %v1693 = vadd.f32 %v1643, %v1387
  %v1694 = vadd.f32 %v1645, %v1389
  %v1695 = vadd.f32 %v1647, %v1391
  %v1696 = vadd.f32 %v1649, %v1393
  %v1697 = vadd.f32 %v1651, %v1395
  %v1698 = vadd.f32 %v1653, %v1397
  %v1699 = vadd.f32 %v1655, %v1399
  %v1700 = vadd.f32 %v1657, %v1401
  %v1701 = vadd.f32 %v1659, %v1403
  %v1702 = vadd.f32 %v1661, %v1405
  %v1703 = vadd.f32 %v1663, %v1407
  %v1704 = vadd.f32 %v1665, %v1409
  %v1705 = vadd.f32 %v1667, %v1411
  %v1706 = vadd.f32 %v1669, %v1413
  %v1707 = vadd.f32 %v1671, %v1415
  %v1708 = vadd.f32 %v1673, %v1417
  %v1709 = vadd.f32 %v1675, %v1419
  %v1710 = vadd.f32 %v1677, %v1421
  %v1711 = vadd.f32 %v1679, %v1423
  %v1712 = vsub.f32 %v1293, %v1680
  %v1713 = vsub.f32 %v1294, %v1681
  %v1714 = vsub.f32 %v1295, %v1682
  %v1715 = vsub.f32 %v1296, %v1683
  %v1716 = vsub.f32 %v1297, %v1684
  %v1717 = vsub.f32 %v1298, %v1685
  %v1718 = vsub.f32 %v1299, %v1686
  %v1719 = vsub.f32 %v1300, %v1687
  %v1720 = vsub.f32 %v1301, %v1688
  %v1721 = vsub.f32 %v1302, %v1689
  %v1722 = vsub.f32 %v1303, %v1690
  %v1723 = vsub.f32 %v1304, %v1691
  %v1724 = vsub.f32 %v1305, %v1692
  %v1725 = vsub.f32 %v1306, %v1693
  %v1726 = vsub.f32 %v1307, %v1694
  %v1727 = vsub.f32 %v1308, %v1695
  %v1728 = vsub.f32 %v1309, %v1696
  %v1729 = vsub.f32 %v1310, %v1697
  %v1730 = vsub.f32 %v1311, %v1698
  %v1731 = vsub.f32 %v1312, %v1699
  %v1732 = vsub.f32 %v1313, %v1700
  %v1733 = vsub.f32 %v1314, %v1701
  %v1734 = vsub.f32 %v1315, %v1702
  %v1735 = vsub.f32 %v1316, %v1703
  %v1736 = vsub.f32 %v1317, %v1704
  %v1737 = vsub.f32 %v1318, %v1705
  %v1738 = vsub.f32 %v1319, %v1706
  %v1739 = vsub.f32 %v1320, %v1707
  %v1740 = vsub.f32 %v1321, %v1708
  %v1741 = vsub.f32 %v1322, %v1709
  %v1742 = vsub.f32 %v1323, %v1710
  %v1743 = vsub.f32 %v1324, %v1711
  %1744 = vst [vmem:[%s4] sm:$0xff] %v1712
  %1745 = vst [vmem:[%s4 + $0x8] sm:$0xff] %v1713
  %1746 = vst [vmem:[%s4 + $0x10] sm:$0xff] %v1714
  %1747 = vst [vmem:[%s4 + $0x18] sm:$0xff] %v1715
  %1748 = vst [vmem:[%s4 + $0x20] sm:$0xff] %v1716
  %1749 = vst [vmem:[%s4 + $0x28] sm:$0xff] %v1717
  %1750 = vst [vmem:[%s4 + $0x30] sm:$0xff] %v1718
  %1751 = vst [vmem:[%s4 + $0x38] sm:$0xff] %v1719
  %1752 = vst [vmem:[%s4 + $0x40] sm:$0xff] %v1720
  %1753 = vst [vmem:[%s4 + $0x48] sm:$0xff] %v1721
  %1754 = vst [vmem:[%s4 + $0x50] sm:$0xff] %v1722
  %1755 = vst [vmem:[%s4 + $0x58] sm:$0xff] %v1723
  %1756 = vst [vmem:[%s4 + $0x60] sm:$0xff] %v1724
  %1757 = vst [vmem:[%s4 + $0x68] sm:$0xff] %v1725
  %1758 = vst [vmem:[%s4 + $0x70] sm:$0xff] %v1726
  %1759 = vst [vmem:[%s4 + $0x78] sm:$0xff] %v1727
  %1760 = vst [vmem:[%s4 + $0x80] sm:$0xff] %v1728
  %1761 = vst [vmem:[%s4 + $0x88] sm:$0xff] %v1729
  %1762 = vst [vmem:[%s4 + $0x90] sm:$0xff] %v1730
  %1763 = vst [vmem:[%s4 + $0x98] sm:$0xff] %v1731
  %1764 = vst [vmem:[%s4 + $0xa0] sm:$0xff] %v1732
  %1765 = vst [vmem:[%s4 + $0xa8] sm:$0xff] %v1733
  %1766 = vst [vmem:[%s4 + $0xb0] sm:$0xff] %v1734
  %1767 = vst [vmem:[%s4 + $0xb8] sm:$0xff] %v1735
  %1768 = vst [vmem:[%s4 + $0xc0] sm:$0xff] %v1736
  %1769 = vst [vmem:[%s4 + $0xc8] sm:$0xff] %v1737
  %1770 = vst [vmem:[%s4 + $0xd0] sm:$0xff] %v1738
  %1771 = vst [vmem:[%s4 + $0xd8] sm:$0xff] %v1739
  %1772 = vst [vmem:[%s4 + $0xe0] sm:$0xff] %v1740
  %1773 = vst [vmem:[%s4 + $0xe8] sm:$0xff] %v1741
  %1774 = vst [vmem:[%s4 + $0xf0] sm:$0xff] %v1742
  %1775 = vst [vmem:[%s4 + $0xf8] sm:$0xff] %v1743
  // Predicated region
  $region18: #{appnp_forward.5} parent=0 // pred_check
    _
  $region19: #{appnp_forward.5} parent=0 // pred_check_branch
    %1777 = sbr.rel (0) target = $region21
  $region20: #{appnp_forward.5} parent=0 // pred_region
    _
  $region21: #{appnp_forward.5} parent=0 // pred_fallthru
    _
  // Predicated region
  $region22: #{appnp_forward.5} parent=0 // pred_check
    _
  $region23: #{appnp_forward.5} parent=0 // pred_check_branch
    %1779 = sbr.rel (0) target = $region25
  $region24: #{appnp_forward.5} parent=0 // pred_region
    _
  $region25: #{appnp_forward.5} parent=0 // pred_fallthru
    _

</llo_original>
